<compile_context>
chip_gen: v6e
topology: v6e:2x2x1
jax: 0.10.0
libtpu: 0.0.40
codegen_flags: <defaults>
</compile_context>

<pallas_src>
import functools

import jax
import jax.numpy as jnp
from jax import lax
from jax.experimental import pallas as pl
from jax.experimental.pallas import tpu as pltpu


def _round_up(a, b):
    return ((a + b - 1) // b) * b


def lstm_gateoutput_kernel(xg_ref, whh_ref, h0_ref, c0_ref, out_ref,
                           h_sc, c_sc, *, hidden_size, unroll):
    """Sequential LSTM recurrence over one chunk of steps.

    xg_ref:  (CHUNK, 4H)  precomputed x @ W_ih^T + (b_ih + b_hh)
    whh_ref: (H, 4H)      hidden->gates weight (transposed, resident)
    h0_ref:  (1, H)       initial hidden (used only at grid step 0)
    c0_ref:  (1, H)       initial cell
    out_ref: (CHUNK, P)   packed per-step [h | f | i | pad], P = roundup(3H,128)
    h_sc/c_sc: (1, H)     state carried across grid steps
    """
    H = hidden_size
    whh = whh_ref[...]

    @pl.when(pl.program_id(0) == 0)
    def _():
        h_sc[...] = h0_ref[...]
        c_sc[...] = c0_ref[...]

    chunk = xg_ref.shape[0]
    n_groups = chunk // unroll
    pad_lanes = out_ref.shape[1] - 3 * H
    pad_row = (jnp.zeros((1, pad_lanes), jnp.float32)
               if pad_lanes > 0 else None)  # hoisted, constant

    def group_body(g, carry):
        h, c = carry  # each (1, H)
        base = pl.multiple_of(g * unroll, unroll)
        # Unrolled 8-step inner loop: gives the scheduler visibility to
        # overlap step s+1's xg load / stores with step s's MXU/EUP latency.
        for j in range(unroll):
            pre = xg_ref[pl.ds(base + j, 1), :] + jnp.dot(
                h, whh, preferred_element_type=jnp.float32)  # (1, 4H)
            gates = jax.nn.sigmoid(pre[:, :3 * H])            # one EUP slab
            g_t = jnp.tanh(pre[:, 3 * H:])
            i_t = gates[:, :H]
            f_t = gates[:, H:2 * H]
            o_t = gates[:, 2 * H:3 * H]
            c = c * f_t + i_t * g_t
            h = o_t * jnp.tanh(c)
            pieces = [h, f_t, i_t]
            if pad_row is not None:
                pieces.append(pad_row)
            # Single lane-dense packed store per step instead of 3 masked ones.
            out_ref[pl.ds(base + j, 1), :] = jnp.concatenate(pieces, axis=-1)
        return (h, c)

    h_fin, c_fin = lax.fori_loop(0, n_groups, group_body,
                                 (h_sc[...], c_sc[...]))
    h_sc[...] = h_fin
    c_sc[...] = c_fin


def my_lstm_with_gateoutput(x, w_ih, b_ih, w_hh, b_hh, h0, c0,
                            *, chunk_steps=256, unroll=8):
    """Pallas wrapper mirroring MYLSTMWithGateoutput.forward.

    x:    (B, T, I)
    w_ih: (4H, I), b_ih: (4H,)   -- PyTorch Linear layout
    w_hh: (4H, H), b_hh: (4H,)
    h0, c0: (H, 1)               -- as produced by _init_hidden
    Returns (outputs, forget_gates, input_gates), each (B, T, H).
    """
    B, T, I = x.shape
    H = w_hh.shape[1]
    S = B * T

    x_flat = x.reshape(S, I).astype(jnp.float32)
    w_ih_t = w_ih.T.astype(jnp.float32)                 # (I, 4H)
    whh_t = w_hh.T.astype(jnp.float32)                  # (H, 4H)
    bias = (b_ih + b_hh).astype(jnp.float32)            # (4H,)

    # Hoisted input projection: one big MXU-shaped matmul (M=S instead of M=1),
    # done by XLA outside the serial recurrence.
    xg = x_flat @ w_ih_t + bias[None, :]                # (S, 4H)

    # Chunk the flattened step axis; pad to a whole number of chunks.  Padded
    # steps only pollute the (discarded) final state and padded output rows.
    chunk = min(chunk_steps, _round_up(S, unroll))
    chunk = _round_up(chunk, unroll)
    s_pad = _round_up(S, chunk)
    if s_pad != S:
        xg = jnp.pad(xg, ((0, s_pad - S), (0, 0)))

    P = _round_up(3 * H, 128)                           # packed lane-dense width
    grid = (s_pad // chunk,)

    h0_r = h0.reshape(1, H).astype(jnp.float32)
    c0_r = c0.reshape(1, H).astype(jnp.float32)

    # Explicit VMEM budget: double-buffered xg + packed-output chunks,
    # resident whh, tiny state.  Capped at 32 MiB (safe even on v7x's 64 MiB
    # physical VMEM / 32 MiB default scoped limit).
    block_bytes = (2 * chunk * 4 * H * 4                # xg, double-buffered
                   + 2 * chunk * P * 4                  # packed out, double-buffered
                   + H * 4 * H * 4                      # whh
                   + 8 * H * 4)                         # h0/c0/state
    vmem_limit = int(min(max(4 * block_bytes, 16 << 20), 32 << 20))

    packed = pl.pallas_call(
        functools.partial(lstm_gateoutput_kernel, hidden_size=H, unroll=unroll),
        out_shape=jax.ShapeDtypeStruct((s_pad, P), jnp.float32),
        grid_spec=pltpu.PrefetchScalarGridSpec(
            num_scalar_prefetch=0,
            grid=grid,
            in_specs=[
                pl.BlockSpec((chunk, 4 * H), lambda i: (i, 0)),   # xg chunk
                pl.BlockSpec((H, 4 * H), lambda i: (0, 0)),       # whh (resident)
                pl.BlockSpec((1, H), lambda i: (0, 0)),           # h0
                pl.BlockSpec((1, H), lambda i: (0, 0)),           # c0
            ],
            out_specs=pl.BlockSpec((chunk, P), lambda i: (i, 0)),
            scratch_shapes=[pltpu.VMEM((1, H), jnp.float32),      # h carry
                            pltpu.VMEM((1, H), jnp.float32)],     # c carry
        ),
        compiler_params=pltpu.CompilerParams(
            # The step axis carries state -> must be "arbitrary".
            dimension_semantics=("arbitrary",),
            vmem_limit_bytes=vmem_limit,
        ),
    )(xg, whh_t, h0_r, c0_r)

    packed = packed[:S]
    outs = packed[:, 0:H].reshape(B, T, H)
    fgates = packed[:, H:2 * H].reshape(B, T, H)
    igates = packed[:, 2 * H:3 * H].reshape(B, T, H)
    return outs, fgates, igates


def ref_lstm_with_gateoutput(x, w_ih, b_ih, w_hh, b_hh, h0, c0):
    """Pure-JAX reference of the exact PyTorch semantics (state carried
    across batches, batch-major step order)."""
    B, T, I = x.shape
    H = w_hh.shape[1]
    x_flat = x.reshape(B * T, I)
    h = h0.reshape(1, H)
    c = c0.reshape(1, H)

    def step(carry, xt):
        h, c = carry
        preact = xt @ w_ih.T + b_ih + h @ w_hh.T + b_hh  # (1, 4H)
        i_t = jax.nn.sigmoid(preact[:, 0:H])
        f_t = jax.nn.sigmoid(preact[:, H:2 * H])
        o_t = jax.nn.sigmoid(preact[:, 2 * H:3 * H])
        g_t = jnp.tanh(preact[:, 3 * H:4 * H])
        c_new = c * f_t + i_t * g_t
        h_new = o_t * jnp.tanh(c_new)
        return (h_new, c_new), (h_new[0], f_t[0], i_t[0])

    _, (hs, fs, is_) = lax.scan(step, (h, c), x_flat)
    return (hs.reshape(B, T, H), fs.reshape(B, T, H), is_.reshape(B, T, H))


if __name__ == "__main__":
    # Small shapes consistent with the module: batch=2, seq=8, input=16, hidden=32.
    B, T, I, H = 2, 8, 16, 32

    key = jax.random.PRNGKey(0)
    kx, kwi, kbi, kwh, kbh, kh0, kc0 = jax.random.split(key, 7)

    bound_i = 1.0 / jnp.sqrt(I)
    bound_h = 1.0 / jnp.sqrt(H)
    x = jax.random.normal(kx, (B, T, I), dtype=jnp.float32)
    w_ih = jax.random.uniform(kwi, (4 * H, I), jnp.float32, -bound_i, bound_i)
    b_ih = jax.random.uniform(kbi, (4 * H,), jnp.float32, -bound_i, bound_i)
    w_hh = jax.random.uniform(kwh, (4 * H, H), jnp.float32, -bound_h, bound_h)
    b_hh = jax.random.uniform(kbh, (4 * H,), jnp.float32, -bound_h, bound_h)
    # _init_hidden: random initial hidden / cell of shape (H, 1).
    h0 = jax.random.normal(kh0, (H, 1), dtype=jnp.float32)
    c0 = jax.random.normal(kc0, (H, 1), dtype=jnp.float32)

    outs, fgates, igates = jax.block_until_ready(
        my_lstm_with_gateoutput(x, w_ih, b_ih, w_hh, b_hh, h0, c0))

    ref_outs, ref_f, ref_i = ref_lstm_with_gateoutput(
        x, w_ih, b_ih, w_hh, b_hh, h0, c0)

    assert outs.shape == (B, T, H)
    assert fgates.shape == (B, T, H)
    assert igates.shape == (B, T, H)
    assert jnp.allclose(outs, ref_outs, atol=1e-5, rtol=1e-5)
    assert jnp.allclose(fgates, ref_f, atol=1e-5, rtol=1e-5)
    assert jnp.allclose(igates, ref_i, atol=1e-5, rtol=1e-5)

    print("KERNEL_OK")
</pallas_src>

<mosaic_0001>
module attributes {stable_mosaic.version = 11 : i64} {
  func.func @lstm_gateoutput_kernel(%arg0: i32, %arg1: memref<16x128xf32, #tpu.memory_space<vmem>>, %arg2: memref<32x128xf32, #tpu.memory_space<vmem>>, %arg3: memref<1x32xf32, #tpu.memory_space<vmem>>, %arg4: memref<1x32xf32, #tpu.memory_space<vmem>>, %arg5: memref<16x128xf32, #tpu.memory_space<vmem>>, %arg6: memref<1x32xf32, #tpu.memory_space<vmem>>, %arg7: memref<1x32xf32, #tpu.memory_space<vmem>>) attributes {dimension_semantics = [#tpu.dimension_semantics<arbitrary>], iteration_bounds = array<i64: 1>, scalar_prefetch = 0 : i64, scratch_operands = 2 : i64, tpu.core_type = #tpu.core_type<tc>, window_params = [{transform_indices = @transform_0, window_bounds = array<i64: 16, 128>}, {pipeline_mode = #tpu.pipeline_mode<synchronous>, transform_indices = @transform_1, window_bounds = array<i64: 32, 128>}, {pipeline_mode = #tpu.pipeline_mode<synchronous>, transform_indices = @transform_2, window_bounds = array<i64: 1, 32>}, {pipeline_mode = #tpu.pipeline_mode<synchronous>, transform_indices = @transform_3, window_bounds = array<i64: 1, 32>}, {transform_indices = @transform_4, window_bounds = array<i64: 16, 128>}]} {
    %c0 = arith.constant 0 : index
    %c0_0 = arith.constant 0 : index
    %0 = vector.load %arg2[%c0, %c0_0] : memref<32x128xf32, #tpu.memory_space<vmem>>, vector<32x128xf32>
    %c0_i32 = arith.constant 0 : i32
    %1 = arith.cmpi eq, %arg0, %c0_i32 : i32
    %2 = arith.extui %1 : i1 to i32
    %c0_i32_1 = arith.constant 0 : i32
    %3 = arith.cmpi ne, %2, %c0_i32_1 : i32
    scf.if %3 {
      %c0_12 = arith.constant 0 : index
      %c0_13 = arith.constant 0 : index
      %11 = vector.load %arg3[%c0_12, %c0_13] : memref<1x32xf32, #tpu.memory_space<vmem>>, vector<1x32xf32>
      %c0_14 = arith.constant 0 : index
      %c0_15 = arith.constant 0 : index
      %12 = vector.load %arg6[%c0_14, %c0_15] : memref<1x32xf32, #tpu.memory_space<vmem>>, vector<1x32xf32>
      tpu.vector_store %arg6[%c0_14, %c0_15], %11 {strides = array<i32>} : memref<1x32xf32, #tpu.memory_space<vmem>>, vector<1x32xf32>,
      %c0_16 = arith.constant 0 : index
      %c0_17 = arith.constant 0 : index
      %13 = vector.load %arg4[%c0_16, %c0_17] : memref<1x32xf32, #tpu.memory_space<vmem>>, vector<1x32xf32>
      %c0_18 = arith.constant 0 : index
      %c0_19 = arith.constant 0 : index
      %14 = vector.load %arg7[%c0_18, %c0_19] : memref<1x32xf32, #tpu.memory_space<vmem>>, vector<1x32xf32>
      tpu.vector_store %arg7[%c0_18, %c0_19], %13 {strides = array<i32>} : memref<1x32xf32, #tpu.memory_space<vmem>>, vector<1x32xf32>,
    } else {
    }
    %cst = arith.constant 0.000000e+00 : f32
    %4 = vector.broadcast %cst : f32 to vector<1x32xf32>
    %c0_2 = arith.constant 0 : index
    %c0_3 = arith.constant 0 : index
    %5 = vector.load %arg6[%c0_2, %c0_3] : memref<1x32xf32, #tpu.memory_space<vmem>>, vector<1x32xf32>
    %c0_4 = arith.constant 0 : index
    %c0_5 = arith.constant 0 : index
    %6 = vector.load %arg7[%c0_4, %c0_5] : memref<1x32xf32, #tpu.memory_space<vmem>>, vector<1x32xf32>
    %c0_i32_6 = arith.constant 0 : i32
    %c2_i32 = arith.constant 2 : i32
    %7 = arith.addi %c0_i32_6, %c2_i32 : i32
    %c1_i32 = arith.constant 1 : i32
    %8:2 = scf.for %arg8 = %c0_i32_6 to %7 step %c1_i32 iter_args(%arg9 = %5, %arg10 = %6) -> (vector<1x32xf32>, vector<1x32xf32>)  : i32 {
      %c8_i32 = arith.constant 8 : i32
      %11 = arith.muli %arg8, %c8_i32 : i32
      %12 = tpu.assume_multiple %11, 8 : i32
      %c0_i32_12 = arith.constant 0 : i32
      %13 = arith.addi %12, %c0_i32_12 : i32
      %14 = arith.index_cast %13 : i32 to index
      %c0_13 = arith.constant 0 : index
      %15 = vector.load %arg1[%14, %c0_13] : memref<16x128xf32, #tpu.memory_space<vmem>>, vector<1x128xf32>
      %cst_14 = arith.constant dense<0.000000e+00> : vector<1x128xf32>
      %16 = tpu.matmul %arg9, %0, %cst_14 {dimension_numbers = #tpu.dot_dimension_numbers<[1], [0], [0], [1], [0, 0, 1, 1], [], []>} : vector<1x32xf32>, vector<32x128xf32>, vector<1x128xf32> -> vector<1x128xf32>
      %17 = arith.addf %15, %16 : vector<1x128xf32>
      %18 = vector.extract_strided_slice %17 {offsets = [0, 0], sizes = [1, 96], strides = [1, 1]} : vector<1x128xf32> to vector<1x96xf32>
      %19 = arith.negf %18 : vector<1x96xf32>
      %20 = math.exp %19 : vector<1x96xf32>
      %cst_15 = arith.constant 1.000000e+00 : f32
      %21 = vector.broadcast %cst_15 : f32 to vector<1x96xf32>
      %22 = arith.addf %21, %20 : vector<1x96xf32>
      %23 = arith.divf %21, %22 : vector<1x96xf32>
      %24 = vector.extract_strided_slice %17 {offsets = [0, 96], sizes = [1, 32], strides = [1, 1]} : vector<1x128xf32> to vector<1x32xf32>
      %25 = math.tanh %24 : vector<1x32xf32>
      %26 = vector.extract_strided_slice %23 {offsets = [0, 0], sizes = [1, 32], strides = [1, 1]} : vector<1x96xf32> to vector<1x32xf32>
      %27 = vector.extract_strided_slice %23 {offsets = [0, 32], sizes = [1, 32], strides = [1, 1]} : vector<1x96xf32> to vector<1x32xf32>
      %28 = vector.extract_strided_slice %23 {offsets = [0, 64], sizes = [1, 32], strides = [1, 1]} : vector<1x96xf32> to vector<1x32xf32>
      %29 = arith.mulf %arg10, %27 : vector<1x32xf32>
      %30 = arith.mulf %26, %25 : vector<1x32xf32>
      %31 = arith.addf %29, %30 : vector<1x32xf32>
      %32 = math.tanh %31 : vector<1x32xf32>
      %33 = arith.mulf %28, %32 : vector<1x32xf32>
      %34 = tpu.concatenate %33, %27, %26, %4 in 1 : vector<1x32xf32>, vector<1x32xf32>, vector<1x32xf32>, vector<1x32xf32> -> vector<1x128xf32>
      %c0_i32_16 = arith.constant 0 : i32
      %35 = arith.addi %12, %c0_i32_16 : i32
      %36 = arith.index_cast %35 : i32 to index
      %c0_17 = arith.constant 0 : index
      %37 = vector.load %arg5[%36, %c0_17] : memref<16x128xf32, #tpu.memory_space<vmem>>, vector<1x128xf32>
      tpu.vector_store %arg5[%36, %c0_17], %34 {strides = array<i32>} : memref<16x128xf32, #tpu.memory_space<vmem>>, vector<1x128xf32>,
      %c1_i32_18 = arith.constant 1 : i32
      %38 = arith.addi %12, %c1_i32_18 : i32
      %39 = arith.index_cast %38 : i32 to index
      %c0_19 = arith.constant 0 : index
      %40 = vector.load %arg1[%39, %c0_19] : memref<16x128xf32, #tpu.memory_space<vmem>>, vector<1x128xf32>
      %cst_20 = arith.constant dense<0.000000e+00> : vector<1x128xf32>
      %41 = tpu.matmul %33, %0, %cst_20 {dimension_numbers = #tpu.dot_dimension_numbers<[1], [0], [0], [1], [0, 0, 1, 1], [], []>} : vector<1x32xf32>, vector<32x128xf32>, vector<1x128xf32> -> vector<1x128xf32>
      %42 = arith.addf %40, %41 : vector<1x128xf32>
      %43 = vector.extract_strided_slice %42 {offsets = [0, 0], sizes = [1, 96], strides = [1, 1]} : vector<1x128xf32> to vector<1x96xf32>
      %44 = arith.negf %43 : vector<1x96xf32>
      %45 = math.exp %44 : vector<1x96xf32>
      %cst_21 = arith.constant 1.000000e+00 : f32
      %46 = vector.broadcast %cst_21 : f32 to vector<1x96xf32>
      %47 = arith.addf %46, %45 : vector<1x96xf32>
      %48 = arith.divf %46, %47 : vector<1x96xf32>
      %49 = vector.extract_strided_slice %42 {offsets = [0, 96], sizes = [1, 32], strides = [1, 1]} : vector<1x128xf32> to vector<1x32xf32>
      %50 = math.tanh %49 : vector<1x32xf32>
      %51 = vector.extract_strided_slice %48 {offsets = [0, 0], sizes = [1, 32], strides = [1, 1]} : vector<1x96xf32> to vector<1x32xf32>
      %52 = vector.extract_strided_slice %48 {offsets = [0, 32], sizes = [1, 32], strides = [1, 1]} : vector<1x96xf32> to vector<1x32xf32>
      %53 = vector.extract_strided_slice %48 {offsets = [0, 64], sizes = [1, 32], strides = [1, 1]} : vector<1x96xf32> to vector<1x32xf32>
      %54 = arith.mulf %31, %52 : vector<1x32xf32>
      %55 = arith.mulf %51, %50 : vector<1x32xf32>
      %56 = arith.addf %54, %55 : vector<1x32xf32>
      %57 = math.tanh %56 : vector<1x32xf32>
      %58 = arith.mulf %53, %57 : vector<1x32xf32>
      %59 = tpu.concatenate %58, %52, %51, %4 in 1 : vector<1x32xf32>, vector<1x32xf32>, vector<1x32xf32>, vector<1x32xf32> -> vector<1x128xf32>
      %c1_i32_22 = arith.constant 1 : i32
      %60 = arith.addi %12, %c1_i32_22 : i32
      %61 = arith.index_cast %60 : i32 to index
      %c0_23 = arith.constant 0 : index
      %62 = vector.load %arg5[%61, %c0_23] : memref<16x128xf32, #tpu.memory_space<vmem>>, vector<1x128xf32>
      tpu.vector_store %arg5[%61, %c0_23], %59 {strides = array<i32>} : memref<16x128xf32, #tpu.memory_space<vmem>>, vector<1x128xf32>,
      %c2_i32_24 = arith.constant 2 : i32
      %63 = arith.addi %12, %c2_i32_24 : i32
      %64 = arith.index_cast %63 : i32 to index
      %c0_25 = arith.constant 0 : index
      %65 = vector.load %arg1[%64, %c0_25] : memref<16x128xf32, #tpu.memory_space<vmem>>, vector<1x128xf32>
      %cst_26 = arith.constant dense<0.000000e+00> : vector<1x128xf32>
      %66 = tpu.matmul %58, %0, %cst_26 {dimension_numbers = #tpu.dot_dimension_numbers<[1], [0], [0], [1], [0, 0, 1, 1], [], []>} : vector<1x32xf32>, vector<32x128xf32>, vector<1x128xf32> -> vector<1x128xf32>
      %67 = arith.addf %65, %66 : vector<1x128xf32>
      %68 = vector.extract_strided_slice %67 {offsets = [0, 0], sizes = [1, 96], strides = [1, 1]} : vector<1x128xf32> to vector<1x96xf32>
      %69 = arith.negf %68 : vector<1x96xf32>
      %70 = math.exp %69 : vector<1x96xf32>
      %cst_27 = arith.constant 1.000000e+00 : f32
      %71 = vector.broadcast %cst_27 : f32 to vector<1x96xf32>
      %72 = arith.addf %71, %70 : vector<1x96xf32>
      %73 = arith.divf %71, %72 : vector<1x96xf32>
      %74 = vector.extract_strided_slice %67 {offsets = [0, 96], sizes = [1, 32], strides = [1, 1]} : vector<1x128xf32> to vector<1x32xf32>
      %75 = math.tanh %74 : vector<1x32xf32>
      %76 = vector.extract_strided_slice %73 {offsets = [0, 0], sizes = [1, 32], strides = [1, 1]} : vector<1x96xf32> to vector<1x32xf32>
      %77 = vector.extract_strided_slice %73 {offsets = [0, 32], sizes = [1, 32], strides = [1, 1]} : vector<1x96xf32> to vector<1x32xf32>
      %78 = vector.extract_strided_slice %73 {offsets = [0, 64], sizes = [1, 32], strides = [1, 1]} : vector<1x96xf32> to vector<1x32xf32>
      %79 = arith.mulf %56, %77 : vector<1x32xf32>
      %80 = arith.mulf %76, %75 : vector<1x32xf32>
      %81 = arith.addf %79, %80 : vector<1x32xf32>
      %82 = math.tanh %81 : vector<1x32xf32>
      %83 = arith.mulf %78, %82 : vector<1x32xf32>
      %84 = tpu.concatenate %83, %77, %76, %4 in 1 : vector<1x32xf32>, vector<1x32xf32>, vector<1x32xf32>, vector<1x32xf32> -> vector<1x128xf32>
      %c2_i32_28 = arith.constant 2 : i32
      %85 = arith.addi %12, %c2_i32_28 : i32
      %86 = arith.index_cast %85 : i32 to index
      %c0_29 = arith.constant 0 : index
      %87 = vector.load %arg5[%86, %c0_29] : memref<16x128xf32, #tpu.memory_space<vmem>>, vector<1x128xf32>
      tpu.vector_store %arg5[%86, %c0_29], %84 {strides = array<i32>} : memref<16x128xf32, #tpu.memory_space<vmem>>, vector<1x128xf32>,
      %c3_i32 = arith.constant 3 : i32
      %88 = arith.addi %12, %c3_i32 : i32
      %89 = arith.index_cast %88 : i32 to index
      %c0_30 = arith.constant 0 : index
      %90 = vector.load %arg1[%89, %c0_30] : memref<16x128xf32, #tpu.memory_space<vmem>>, vector<1x128xf32>
      %cst_31 = arith.constant dense<0.000000e+00> : vector<1x128xf32>
      %91 = tpu.matmul %83, %0, %cst_31 {dimension_numbers = #tpu.dot_dimension_numbers<[1], [0], [0], [1], [0, 0, 1, 1], [], []>} : vector<1x32xf32>, vector<32x128xf32>, vector<1x128xf32> -> vector<1x128xf32>
      %92 = arith.addf %90, %91 : vector<1x128xf32>
      %93 = vector.extract_strided_slice %92 {offsets = [0, 0], sizes = [1, 96], strides = [1, 1]} : vector<1x128xf32> to vector<1x96xf32>
      %94 = arith.negf %93 : vector<1x96xf32>
      %95 = math.exp %94 : vector<1x96xf32>
      %cst_32 = arith.constant 1.000000e+00 : f32
      %96 = vector.broadcast %cst_32 : f32 to vector<1x96xf32>
      %97 = arith.addf %96, %95 : vector<1x96xf32>
      %98 = arith.divf %96, %97 : vector<1x96xf32>
      %99 = vector.extract_strided_slice %92 {offsets = [0, 96], sizes = [1, 32], strides = [1, 1]} : vector<1x128xf32> to vector<1x32xf32>
      %100 = math.tanh %99 : vector<1x32xf32>
      %101 = vector.extract_strided_slice %98 {offsets = [0, 0], sizes = [1, 32], strides = [1, 1]} : vector<1x96xf32> to vector<1x32xf32>
      %102 = vector.extract_strided_slice %98 {offsets = [0, 32], sizes = [1, 32], strides = [1, 1]} : vector<1x96xf32> to vector<1x32xf32>
      %103 = vector.extract_strided_slice %98 {offsets = [0, 64], sizes = [1, 32], strides = [1, 1]} : vector<1x96xf32> to vector<1x32xf32>
      %104 = arith.mulf %81, %102 : vector<1x32xf32>
      %105 = arith.mulf %101, %100 : vector<1x32xf32>
      %106 = arith.addf %104, %105 : vector<1x32xf32>
      %107 = math.tanh %106 : vector<1x32xf32>
      %108 = arith.mulf %103, %107 : vector<1x32xf32>
      %109 = tpu.concatenate %108, %102, %101, %4 in 1 : vector<1x32xf32>, vector<1x32xf32>, vector<1x32xf32>, vector<1x32xf32> -> vector<1x128xf32>
      %c3_i32_33 = arith.constant 3 : i32
      %110 = arith.addi %12, %c3_i32_33 : i32
      %111 = arith.index_cast %110 : i32 to index
      %c0_34 = arith.constant 0 : index
      %112 = vector.load %arg5[%111, %c0_34] : memref<16x128xf32, #tpu.memory_space<vmem>>, vector<1x128xf32>
      tpu.vector_store %arg5[%111, %c0_34], %109 {strides = array<i32>} : memref<16x128xf32, #tpu.memory_space<vmem>>, vector<1x128xf32>,
      %c4_i32 = arith.constant 4 : i32
      %113 = arith.addi %12, %c4_i32 : i32
      %114 = arith.index_cast %113 : i32 to index
      %c0_35 = arith.constant 0 : index
      %115 = vector.load %arg1[%114, %c0_35] : memref<16x128xf32, #tpu.memory_space<vmem>>, vector<1x128xf32>
      %cst_36 = arith.constant dense<0.000000e+00> : vector<1x128xf32>
      %116 = tpu.matmul %108, %0, %cst_36 {dimension_numbers = #tpu.dot_dimension_numbers<[1], [0], [0], [1], [0, 0, 1, 1], [], []>} : vector<1x32xf32>, vector<32x128xf32>, vector<1x128xf32> -> vector<1x128xf32>
      %117 = arith.addf %115, %116 : vector<1x128xf32>
      %118 = vector.extract_strided_slice %117 {offsets = [0, 0], sizes = [1, 96], strides = [1, 1]} : vector<1x128xf32> to vector<1x96xf32>
      %119 = arith.negf %118 : vector<1x96xf32>
      %120 = math.exp %119 : vector<1x96xf32>
      %cst_37 = arith.constant 1.000000e+00 : f32
      %121 = vector.broadcast %cst_37 : f32 to vector<1x96xf32>
      %122 = arith.addf %121, %120 : vector<1x96xf32>
      %123 = arith.divf %121, %122 : vector<1x96xf32>
      %124 = vector.extract_strided_slice %117 {offsets = [0, 96], sizes = [1, 32], strides = [1, 1]} : vector<1x128xf32> to vector<1x32xf32>
      %125 = math.tanh %124 : vector<1x32xf32>
      %126 = vector.extract_strided_slice %123 {offsets = [0, 0], sizes = [1, 32], strides = [1, 1]} : vector<1x96xf32> to vector<1x32xf32>
      %127 = vector.extract_strided_slice %123 {offsets = [0, 32], sizes = [1, 32], strides = [1, 1]} : vector<1x96xf32> to vector<1x32xf32>
      %128 = vector.extract_strided_slice %123 {offsets = [0, 64], sizes = [1, 32], strides = [1, 1]} : vector<1x96xf32> to vector<1x32xf32>
      %129 = arith.mulf %106, %127 : vector<1x32xf32>
      %130 = arith.mulf %126, %125 : vector<1x32xf32>
      %131 = arith.addf %129, %130 : vector<1x32xf32>
      %132 = math.tanh %131 : vector<1x32xf32>
      %133 = arith.mulf %128, %132 : vector<1x32xf32>
      %134 = tpu.concatenate %133, %127, %126, %4 in 1 : vector<1x32xf32>, vector<1x32xf32>, vector<1x32xf32>, vector<1x32xf32> -> vector<1x128xf32>
      %c4_i32_38 = arith.constant 4 : i32
      %135 = arith.addi %12, %c4_i32_38 : i32
      %136 = arith.index_cast %135 : i32 to index
      %c0_39 = arith.constant 0 : index
      %137 = vector.load %arg5[%136, %c0_39] : memref<16x128xf32, #tpu.memory_space<vmem>>, vector<1x128xf32>
      tpu.vector_store %arg5[%136, %c0_39], %134 {strides = array<i32>} : memref<16x128xf32, #tpu.memory_space<vmem>>, vector<1x128xf32>,
      %c5_i32 = arith.constant 5 : i32
      %138 = arith.addi %12, %c5_i32 : i32
      %139 = arith.index_cast %138 : i32 to index
      %c0_40 = arith.constant 0 : index
      %140 = vector.load %arg1[%139, %c0_40] : memref<16x128xf32, #tpu.memory_space<vmem>>, vector<1x128xf32>
      %cst_41 = arith.constant dense<0.000000e+00> : vector<1x128xf32>
      %141 = tpu.matmul %133, %0, %cst_41 {dimension_numbers = #tpu.dot_dimension_numbers<[1], [0], [0], [1], [0, 0, 1, 1], [], []>} : vector<1x32xf32>, vector<32x128xf32>, vector<1x128xf32> -> vector<1x128xf32>
      %142 = arith.addf %140, %141 : vector<1x128xf32>
      %143 = vector.extract_strided_slice %142 {offsets = [0, 0], sizes = [1, 96], strides = [1, 1]} : vector<1x128xf32> to vector<1x96xf32>
      %144 = arith.negf %143 : vector<1x96xf32>
      %145 = math.exp %144 : vector<1x96xf32>
      %cst_42 = arith.constant 1.000000e+00 : f32
      %146 = vector.broadcast %cst_42 : f32 to vector<1x96xf32>
      %147 = arith.addf %146, %145 : vector<1x96xf32>
      %148 = arith.divf %146, %147 : vector<1x96xf32>
      %149 = vector.extract_strided_slice %142 {offsets = [0, 96], sizes = [1, 32], strides = [1, 1]} : vector<1x128xf32> to vector<1x32xf32>
      %150 = math.tanh %149 : vector<1x32xf32>
      %151 = vector.extract_strided_slice %148 {offsets = [0, 0], sizes = [1, 32], strides = [1, 1]} : vector<1x96xf32> to vector<1x32xf32>
      %152 = vector.extract_strided_slice %148 {offsets = [0, 32], sizes = [1, 32], strides = [1, 1]} : vector<1x96xf32> to vector<1x32xf32>
      %153 = vector.extract_strided_slice %148 {offsets = [0, 64], sizes = [1, 32], strides = [1, 1]} : vector<1x96xf32> to vector<1x32xf32>
      %154 = arith.mulf %131, %152 : vector<1x32xf32>
      %155 = arith.mulf %151, %150 : vector<1x32xf32>
      %156 = arith.addf %154, %155 : vector<1x32xf32>
      %157 = math.tanh %156 : vector<1x32xf32>
      %158 = arith.mulf %153, %157 : vector<1x32xf32>
      %159 = tpu.concatenate %158, %152, %151, %4 in 1 : vector<1x32xf32>, vector<1x32xf32>, vector<1x32xf32>, vector<1x32xf32> -> vector<1x128xf32>
      %c5_i32_43 = arith.constant 5 : i32
      %160 = arith.addi %12, %c5_i32_43 : i32
      %161 = arith.index_cast %160 : i32 to index
      %c0_44 = arith.constant 0 : index
      %162 = vector.load %arg5[%161, %c0_44] : memref<16x128xf32, #tpu.memory_space<vmem>>, vector<1x128xf32>
      tpu.vector_store %arg5[%161, %c0_44], %159 {strides = array<i32>} : memref<16x128xf32, #tpu.memory_space<vmem>>, vector<1x128xf32>,
      %c6_i32 = arith.constant 6 : i32
      %163 = arith.addi %12, %c6_i32 : i32
      %164 = arith.index_cast %163 : i32 to index
      %c0_45 = arith.constant 0 : index
      %165 = vector.load %arg1[%164, %c0_45] : memref<16x128xf32, #tpu.memory_space<vmem>>, vector<1x128xf32>
      %cst_46 = arith.constant dense<0.000000e+00> : vector<1x128xf32>
      %166 = tpu.matmul %158, %0, %cst_46 {dimension_numbers = #tpu.dot_dimension_numbers<[1], [0], [0], [1], [0, 0, 1, 1], [], []>} : vector<1x32xf32>, vector<32x128xf32>, vector<1x128xf32> -> vector<1x128xf32>
      %167 = arith.addf %165, %166 : vector<1x128xf32>
      %168 = vector.extract_strided_slice %167 {offsets = [0, 0], sizes = [1, 96], strides = [1, 1]} : vector<1x128xf32> to vector<1x96xf32>
      %169 = arith.negf %168 : vector<1x96xf32>
      %170 = math.exp %169 : vector<1x96xf32>
      %cst_47 = arith.constant 1.000000e+00 : f32
      %171 = vector.broadcast %cst_47 : f32 to vector<1x96xf32>
      %172 = arith.addf %171, %170 : vector<1x96xf32>
      %173 = arith.divf %171, %172 : vector<1x96xf32>
      %174 = vector.extract_strided_slice %167 {offsets = [0, 96], sizes = [1, 32], strides = [1, 1]} : vector<1x128xf32> to vector<1x32xf32>
      %175 = math.tanh %174 : vector<1x32xf32>
      %176 = vector.extract_strided_slice %173 {offsets = [0, 0], sizes = [1, 32], strides = [1, 1]} : vector<1x96xf32> to vector<1x32xf32>
      %177 = vector.extract_strided_slice %173 {offsets = [0, 32], sizes = [1, 32], strides = [1, 1]} : vector<1x96xf32> to vector<1x32xf32>
      %178 = vector.extract_strided_slice %173 {offsets = [0, 64], sizes = [1, 32], strides = [1, 1]} : vector<1x96xf32> to vector<1x32xf32>
      %179 = arith.mulf %156, %177 : vector<1x32xf32>
      %180 = arith.mulf %176, %175 : vector<1x32xf32>
      %181 = arith.addf %179, %180 : vector<1x32xf32>
      %182 = math.tanh %181 : vector<1x32xf32>
      %183 = arith.mulf %178, %182 : vector<1x32xf32>
      %184 = tpu.concatenate %183, %177, %176, %4 in 1 : vector<1x32xf32>, vector<1x32xf32>, vector<1x32xf32>, vector<1x32xf32> -> vector<1x128xf32>
      %c6_i32_48 = arith.constant 6 : i32
      %185 = arith.addi %12, %c6_i32_48 : i32
      %186 = arith.index_cast %185 : i32 to index
      %c0_49 = arith.constant 0 : index
      %187 = vector.load %arg5[%186, %c0_49] : memref<16x128xf32, #tpu.memory_space<vmem>>, vector<1x128xf32>
      tpu.vector_store %arg5[%186, %c0_49], %184 {strides = array<i32>} : memref<16x128xf32, #tpu.memory_space<vmem>>, vector<1x128xf32>,
      %c7_i32 = arith.constant 7 : i32
      %188 = arith.addi %12, %c7_i32 : i32
      %189 = arith.index_cast %188 : i32 to index
      %c0_50 = arith.constant 0 : index
      %190 = vector.load %arg1[%189, %c0_50] : memref<16x128xf32, #tpu.memory_space<vmem>>, vector<1x128xf32>
      %cst_51 = arith.constant dense<0.000000e+00> : vector<1x128xf32>
      %191 = tpu.matmul %183, %0, %cst_51 {dimension_numbers = #tpu.dot_dimension_numbers<[1], [0], [0], [1], [0, 0, 1, 1], [], []>} : vector<1x32xf32>, vector<32x128xf32>, vector<1x128xf32> -> vector<1x128xf32>
      %192 = arith.addf %190, %191 : vector<1x128xf32>
      %193 = vector.extract_strided_slice %192 {offsets = [0, 0], sizes = [1, 96], strides = [1, 1]} : vector<1x128xf32> to vector<1x96xf32>
      %194 = arith.negf %193 : vector<1x96xf32>
      %195 = math.exp %194 : vector<1x96xf32>
      %cst_52 = arith.constant 1.000000e+00 : f32
      %196 = vector.broadcast %cst_52 : f32 to vector<1x96xf32>
      %197 = arith.addf %196, %195 : vector<1x96xf32>
      %198 = arith.divf %196, %197 : vector<1x96xf32>
      %199 = vector.extract_strided_slice %192 {offsets = [0, 96], sizes = [1, 32], strides = [1, 1]} : vector<1x128xf32> to vector<1x32xf32>
      %200 = math.tanh %199 : vector<1x32xf32>
      %201 = vector.extract_strided_slice %198 {offsets = [0, 0], sizes = [1, 32], strides = [1, 1]} : vector<1x96xf32> to vector<1x32xf32>
      %202 = vector.extract_strided_slice %198 {offsets = [0, 32], sizes = [1, 32], strides = [1, 1]} : vector<1x96xf32> to vector<1x32xf32>
      %203 = vector.extract_strided_slice %198 {offsets = [0, 64], sizes = [1, 32], strides = [1, 1]} : vector<1x96xf32> to vector<1x32xf32>
      %204 = arith.mulf %181, %202 : vector<1x32xf32>
      %205 = arith.mulf %201, %200 : vector<1x32xf32>
      %206 = arith.addf %204, %205 : vector<1x32xf32>
      %207 = math.tanh %206 : vector<1x32xf32>
      %208 = arith.mulf %203, %207 : vector<1x32xf32>
      %209 = tpu.concatenate %208, %202, %201, %4 in 1 : vector<1x32xf32>, vector<1x32xf32>, vector<1x32xf32>, vector<1x32xf32> -> vector<1x128xf32>
      %c7_i32_53 = arith.constant 7 : i32
      %210 = arith.addi %12, %c7_i32_53 : i32
      %211 = arith.index_cast %210 : i32 to index
      %c0_54 = arith.constant 0 : index
      %212 = vector.load %arg5[%211, %c0_54] : memref<16x128xf32, #tpu.memory_space<vmem>>, vector<1x128xf32>
      tpu.vector_store %arg5[%211, %c0_54], %209 {strides = array<i32>} : memref<16x128xf32, #tpu.memory_space<vmem>>, vector<1x128xf32>,
      scf.yield %208, %206 : vector<1x32xf32>, vector<1x32xf32>
    }
    %c2_i32_7 = arith.constant 2 : i32
    %c0_8 = arith.constant 0 : index
    %c0_9 = arith.constant 0 : index
    %9 = vector.load %arg6[%c0_8, %c0_9] : memref<1x32xf32, #tpu.memory_space<vmem>>, vector<1x32xf32>
    tpu.vector_store %arg6[%c0_8, %c0_9], %8#0 {strides = array<i32>} : memref<1x32xf32, #tpu.memory_space<vmem>>, vector<1x32xf32>,
    %c0_10 = arith.constant 0 : index
    %c0_11 = arith.constant 0 : index
    %10 = vector.load %arg7[%c0_10, %c0_11] : memref<1x32xf32, #tpu.memory_space<vmem>>, vector<1x32xf32>
    tpu.vector_store %arg7[%c0_10, %c0_11], %8#1 {strides = array<i32>} : memref<1x32xf32, #tpu.memory_space<vmem>>, vector<1x32xf32>,
    return
  }
  func.func @transform_0(%arg0: i32) -> (i32, i32) {
    %c0_i32 = arith.constant 0 : i32
    %c0_i32_0 = arith.constant 0 : i32
    return %arg0, %c0_i32 : i32, i32
  }
  func.func @transform_1(%arg0: i32) -> (i32, i32) {
    %c0_i32 = arith.constant 0 : i32
    %c0_i32_0 = arith.constant 0 : i32
    %c0_i32_1 = arith.constant 0 : i32
    return %c0_i32, %c0_i32_0 : i32, i32
  }
  func.func @transform_2(%arg0: i32) -> (i32, i32) {
    %c0_i32 = arith.constant 0 : i32
    %c0_i32_0 = arith.constant 0 : i32
    %c0_i32_1 = arith.constant 0 : i32
    return %c0_i32, %c0_i32_0 : i32, i32
  }
  func.func @transform_3(%arg0: i32) -> (i32, i32) {
    %c0_i32 = arith.constant 0 : i32
    %c0_i32_0 = arith.constant 0 : i32
    %c0_i32_1 = arith.constant 0 : i32
    return %c0_i32, %c0_i32_0 : i32, i32
  }
  func.func @transform_4(%arg0: i32) -> (i32, i32) {
    %c0_i32 = arith.constant 0 : i32
    %c0_i32_0 = arith.constant 0 : i32
    return %arg0, %c0_i32 : i32, i32
  }
}

</mosaic_0001>

<llo_original>
// kernel: tpu_custom_call.1
$region0: #{tpu_custom_call.1}
  #allocation0 [shape = 'u32[]', space=smem, size = 0x4, offset = 0x4, fixed_abs, tag = 'smem constant byte address 0x4 - core index']
  #allocation1 [shape = 'u32[144,128]{1,0:T(1,128)}', space=vmem, size = 0x12000, scoped, tag = 'internal scratch']
  #allocation2 [shape = 'f32[1,32]{1,0:T(1,128)}', space=vmem, size = 0x200, scoped, tag = 'scratch operand']
  #allocation3 [shape = 'f32[1,32]{1,0:T(1,128)}', space=vmem, size = 0x200, scoped, tag = 'scratch operand']
  %s0 = inlined_call_operand.hbm [shape: f32[16,128], index: 0, kind: input, shape index: {}]
  %s1 = inlined_call_operand.hbm [shape: f32[32,128], index: 1, kind: input, shape index: {}]
  %s2 = inlined_call_operand.vmem [shape: f32[1,32], index: 2, kind: input, shape index: {}]
  %s3 = inlined_call_operand.vmem [shape: f32[1,32], index: 3, kind: input, shape index: {}]
  %s4 = inlined_call_operand.hbm [shape: f32[16,128], index: 4, kind: output, shape index: {}]
  %s5 = sld [smem:[#allocation0]]
  $region45: #{tpu_custom_call.1} parent=0
    _
  %s7 = ssub.s32 1, %s5
  %s8 = scalar_select 0, %s7, %s5
  $region1: #{tpu_custom_call.1} parent=0
    #allocation4 [shape = 'u8[8192]{0}', space=vmem, size = 0x2000, scoped, tag = 'input window, operand 0, single buffered']
    #allocation5 [shape = 's32[1]{0}', space=sflag, size = 0x4, scoped, tag = 'scoped memory for tpu_custom_call.1']
    #allocation6 [shape = 's32[1]{0}', space=sflag, size = 0x4, scoped, tag = 'scoped memory for tpu_custom_call.1']
    #allocation7 [shape = 'u8[16384]{0}', space=vmem, size = 0x4000, scoped, tag = 'input window, operand 1, single buffered']
    #allocation8 [shape = 's32[1]{0}', space=sflag, size = 0x4, scoped, tag = 'scoped memory for tpu_custom_call.1']
    #allocation9 [shape = 'u8[8192]{0}', space=vmem, size = 0x2000, scoped, tag = 'output window, operand 0, single buffered']
    %9 = vsyncpa [#allocation5], 0
    %10 = vsyncpa [#allocation8], 0
    %11 = vsyncpa [#allocation6], 0
    // Predicated region
    $region2: #{tpu_custom_call.1} parent=1 // pred_check
      _
    $region3: #{tpu_custom_call.1} parent=1 // pred_check_branch
      %13 = sbr.rel (0) target = $region5
    $region4: #{tpu_custom_call.1} parent=1 // pred_region
      %s15 = ssub.s32 256, 256
      %16 = vsyncadd [#allocation5], %s15
      %s17 = sshll.u32 [#allocation4], 4
      %s18 = int_to_ptr.vmem [resolvable:$true] %s17
      %23 = dma.hbm_to_vmem [thread:$0]  %s0, 256, %s18, [#allocation5], 128, 128, 8
    $region5: #{tpu_custom_call.1} parent=1 // pred_fallthru
      _
    // Predicated region
    $region6: #{tpu_custom_call.1} parent=1 // pred_check
      _
    $region7: #{tpu_custom_call.1} parent=1 // pred_check_branch
      %25 = sbr.rel (0) target = $region9
    $region8: #{tpu_custom_call.1} parent=1 // pred_region
      %s27 = ssub.s32 512, 512
      %28 = vsyncadd [#allocation8], %s27
      %s29 = sshll.u32 [#allocation7], 4
      %s30 = int_to_ptr.vmem [resolvable:$true] %s29
      %35 = dma.hbm_to_vmem [thread:$0]  %s1, 512, %s30, [#allocation8], 128, 128, 8
    $region9: #{tpu_custom_call.1} parent=1 // pred_fallthru
      _
    // Predicated region
    $region10: #{tpu_custom_call.1} parent=1 // pred_check
      _
    $region11: #{tpu_custom_call.1} parent=1 // pred_check_branch
      %37 = sbr.rel (0) target = $region13
    $region12: #{tpu_custom_call.1} parent=1 // pred_region
      _
    $region13: #{tpu_custom_call.1} parent=1 // pred_fallthru
      _
    // Predicated region
    $region14: #{tpu_custom_call.1} parent=1 // pred_check
      _
    $region15: #{tpu_custom_call.1} parent=1 // pred_check_branch
      %39 = sbr.rel (0) target = $region17
    $region16: #{tpu_custom_call.1} parent=1 // pred_region
      _
    $region17: #{tpu_custom_call.1} parent=1 // pred_fallthru
      _
    // Predicated region
    $region18: #{tpu_custom_call.1} parent=1 // pred_check
      _
    $region19: #{tpu_custom_call.1} parent=1 // pred_check_branch
      %41 = sbr.rel (0) target = $region21
    $region20: #{tpu_custom_call.1} parent=1 // pred_region
      %42 = dma.done [#allocation5], 256
    $region21: #{tpu_custom_call.1} parent=1 // pred_fallthru
      _
    // Predicated region
    $region22: #{tpu_custom_call.1} parent=1 // pred_check
      _
    $region23: #{tpu_custom_call.1} parent=1 // pred_check_branch
      %44 = sbr.rel (0) target = $region25
    $region24: #{tpu_custom_call.1} parent=1 // pred_region
      %45 = dma.done [#allocation8], 512
    $region25: #{tpu_custom_call.1} parent=1 // pred_fallthru
      _
    %v46 = vld [vmem:[#allocation7] sm:$0xff]
    %v47 = vld [vmem:[#allocation7 + $0x8] sm:$0xff]
    %v48 = vld [vmem:[#allocation7 + $0x10] sm:$0xff]
    %v49 = vld [vmem:[#allocation7 + $0x18] sm:$0xff]
    %p50 = scmp.eq.s32.totalorder 0, 0
    // Predicated region
    $region26: #{tpu_custom_call.1} parent=1 // pred_check
      %p51 = pneg %p50
    $region27: #{tpu_custom_call.1} parent=1 // pred_check_branch
      %53 = sbr.rel (%p51) target = $region29
    $region28: #{tpu_custom_call.1} parent=1 // pred_region
      %v54 = vld [vmem:[%s2] sm:$0x1]
      %vm55 = vcmask 253952
      %56 = vst.msk [vmem:[#allocation2] sm:$0x1] %vm55, %v54
      %v57 = vld [vmem:[%s3] sm:$0x1]
      %58 = vst.msk [vmem:[#allocation3] sm:$0x1] %vm55, %v57
    $region29: #{tpu_custom_call.1} parent=1 // pred_fallthru
      _
    %v59 = vld [vmem:[#allocation2] sm:$0x1]
    %v60 = vld [vmem:[#allocation3] sm:$0x1]
    loop: start=0, step=1, limit=2
    $region30: #{tpu_custom_call.1} parent=1 // loop_pre_header
      _
    $region31: #{tpu_custom_call.1} parent=1 // loop_header
      %s62 = sphi 0, %s66
      %p63 = scmp.ge.s32.totalorder %s62, 2
      %v67 = vphi %v59, %v1103
      %v68 = vphi %v60, %v1090
    $region32: #{tpu_custom_call.1} parent=1 // loop_header_branch
      %65 = sbr.rel (%p63) target = $region36
    $region33: #{tpu_custom_call.1} parent=1 // loop_body
      %s69 = smul.u32 %s62, 8
      %s70 = scalar_lea.vmem [#allocation4], %s69
      %v71 = vld [vmem:[%s70] sm:$0x1]
      %vm72 = vcmask 261120
      %v74 = vsel %vm72, %v67, 0
      %76 = vmatprep.subr.mxu0 0.0
      %77 = vmatpush1.msra.mxu0 0.0
      %78 = vmatprep.subr.mxu0 0.0
      %79 = vmatpush1.msra.mxu0 0.0
      %80 = vmatprep.subr.mxu0 0.0
      %81 = vmatpush1.msra.mxu0 0.0
      %82 = vmatprep.subr.mxu0 0.0
      %83 = vmatpush1.msra.mxu0 0.0
      %84 = vmatprep.subr.mxu0 0.0
      %85 = vmatpush1.msra.mxu0 0.0
      %86 = vmatprep.subr.mxu0 0.0
      %87 = vmatpush1.msra.mxu0 0.0
      %88 = vmatprep.subr.mxu0 0.0
      %89 = vmatpush1.msra.mxu0 0.0
      %90 = vmatprep.subr.mxu0 0.0
      %91 = vmatpush1.msra.mxu0 0.0
      %92 = vmatprep.subr.mxu0 0.0
      %93 = vmatpush1.msra.mxu0 0.0
      %94 = vmatprep.subr.mxu0 0.0
      %95 = vmatpush1.msra.mxu0 0.0
      %96 = vmatprep.subr.mxu0 0.0
      %97 = vmatpush1.msra.mxu0 0.0
      %98 = vmatprep.subr.mxu0 0.0
      %99 = vmatpush1.msra.mxu0 0.0
      %100 = vmatprep.subr.mxu0 0.0
      %101 = vmatpush1.msra.mxu0 %v49
      %102 = vmatprep.subr.mxu0 0.0
      %103 = vmatpush1.msra.mxu0 %v48
      %104 = vmatprep.subr.mxu0 0.0
      %105 = vmatpush1.msra.mxu0 %v47
      %106 = vmatprep.subr.mxu0 0.0
      %107 = vmatpush1.msra.mxu0 %v46
      %108 = vmatprep.subr.mxu0 0.0
      %109 = vmatpush2.msra.mxu0 0.0
      %110 = vmatprep.subr.mxu0 0.0
      %111 = vmatpush2.msra.mxu0 0.0
      %112 = vmatprep.subr.mxu0 0.0
      %113 = vmatpush2.msra.mxu0 0.0
      %114 = vmatprep.subr.mxu0 0.0
      %115 = vmatpush2.msra.mxu0 0.0
      %116 = vmatprep.subr.mxu0 0.0
      %117 = vmatpush2.msra.mxu0 0.0
      %118 = vmatprep.subr.mxu0 0.0
      %119 = vmatpush2.msra.mxu0 0.0
      %120 = vmatprep.subr.mxu0 0.0
      %121 = vmatpush2.msra.mxu0 0.0
      %122 = vmatprep.subr.mxu0 0.0
      %123 = vmatpush2.msra.mxu0 0.0
      %124 = vmatprep.subr.mxu0 0.0
      %125 = vmatpush2.msra.mxu0 0.0
      %126 = vmatprep.subr.mxu0 0.0
      %127 = vmatpush2.msra.mxu0 0.0
      %128 = vmatprep.subr.mxu0 0.0
      %129 = vmatpush2.msra.mxu0 0.0
      %130 = vmatprep.subr.mxu0 0.0
      %131 = vmatpush2.msra.mxu0 0.0
      %132 = vmatprep.subr.mxu0 0.0
      %133 = vmatpush2.msra.mxu0 0.0
      %134 = vmatprep.subr.mxu0 0.0
      %135 = vmatpush2.msra.mxu0 0.0
      %136 = vmatprep.subr.mxu0 0.0
      %137 = vmatpush2.msra.mxu0 0.0
      %138 = vmatprep.subr.mxu0 0.0
      %139 = vmatpush2.msra.mxu0 0.0
      %140 = vmatprep.mubr.f32.mxu0 0.0
      %141 = vmatmul.mubr.f32.gmra.mxu0 %v74
      %v142 = vpop.f32.mrf.mxu0
      %v143 = vadd.f32 0.0, %v142
      %v144 = vpop.f32.mrf.mxu0
      %145 = vdwg.mxu0
      %v146 = vadd.f32 %v71, %v143
      %v147 = vxor.u32 %v146, 2147483648
      %v148 = vmul.f32 %v147, 1.442695
      %v149 = vpow.pop %v148
      %v150 = vadd.f32 %v149, 1.0
      %v151 = vrcp.pop %v150
      %v152 = vmul.f32 1.0, %v151
      %v153 = vtanh.pop %v146
      %v156 = vunpack.c.l.s4 1966171168
      %v157 = vunpack.c.0.s8 %v156
      %v158 = vlaneseq
      %v159 = vshrl.u32 %v158, 7
      %v160 = vsub.s32 %v157, %v159
      %v161 = vrot.slane %v152, %v160
      %v163 = vunpack.c.l.s4 1966171168
      %v164 = vunpack.c.0.s8 %v163
      %v165 = vlaneseq
      %v166 = vshrl.u32 %v165, 7
      %v167 = vsub.s32 %v164, %v166
      %v168 = vrot.slane %v161, %v167
      %169 = vrot.lane.b32.xlu0 %v168, 96
      %v170 = vpop.permute.xlu0 %169
      %v172 = vmul.f32 %v68, %v170
      %174 = vrot.lane.b32.xlu0 %v153, 32
      %v175 = vpop.permute.xlu0 %174
      %v177 = vmul.f32 %v152, %v175
      %v178 = vadd.f32 %v172, %v177
      %v179 = vtanh.pop %v178
      %v181 = vlaneseq
      %v182 = vshrl.u32 %v181, 7
      %v183 = vsub.s32 0, %v182
      %v184 = vrot.slane %v179, %v183
      %185 = vrot.lane.b32.xlu0 %v184, 64
      %v186 = vpop.permute.xlu0 %185
      %v188 = vmul.f32 %v152, %v186
      %190 = vrot.lane.b32.xlu0 %v188, 64
      %v191 = vpop.permute.xlu0 %190
      %193 = vrot.lane.b32.xlu0 %v152, 64
      %v194 = vpop.permute.xlu0 %193
      %v196 = vsel %vm72, %v191, %v152
      %vm197 = vcmask 523264
      %v198 = vsel %vm197, %v196, %v194
      %vm199 = vcmask 785408
      %v200 = vsel %vm199, %v198, 0.0
      %s201 = scalar_lea.vmem [#allocation9], %s69
      %202 = vst [vmem:[%s201] sm:$0x1] %v200
      %s203 = sadd.s32 %s69, 1
      %s204 = scalar_lea.vmem [#allocation4], %s203
      %v205 = vld [vmem:[%s204] sm:$0x1]
      %v206 = vsel %vm72, %v191, 0
      %208 = vmatprep.subr.mxu0 0.0
      %209 = vmatpush1.msra.mxu0 0.0
      %210 = vmatprep.subr.mxu0 0.0
      %211 = vmatpush1.msra.mxu0 0.0
      %212 = vmatprep.subr.mxu0 0.0
      %213 = vmatpush1.msra.mxu0 0.0
      %214 = vmatprep.subr.mxu0 0.0
      %215 = vmatpush1.msra.mxu0 0.0
      %216 = vmatprep.subr.mxu0 0.0
      %217 = vmatpush1.msra.mxu0 0.0
      %218 = vmatprep.subr.mxu0 0.0
      %219 = vmatpush1.msra.mxu0 0.0
      %220 = vmatprep.subr.mxu0 0.0
      %221 = vmatpush1.msra.mxu0 0.0
      %222 = vmatprep.subr.mxu0 0.0
      %223 = vmatpush1.msra.mxu0 0.0
      %224 = vmatprep.subr.mxu0 0.0
      %225 = vmatpush1.msra.mxu0 0.0
      %226 = vmatprep.subr.mxu0 0.0
      %227 = vmatpush1.msra.mxu0 0.0
      %228 = vmatprep.subr.mxu0 0.0
      %229 = vmatpush1.msra.mxu0 0.0
      %230 = vmatprep.subr.mxu0 0.0
      %231 = vmatpush1.msra.mxu0 0.0
      %232 = vmatprep.subr.mxu0 0.0
      %233 = vmatpush1.msra.mxu0 %v49
      %234 = vmatprep.subr.mxu0 0.0
      %235 = vmatpush1.msra.mxu0 %v48
      %236 = vmatprep.subr.mxu0 0.0
      %237 = vmatpush1.msra.mxu0 %v47
      %238 = vmatprep.subr.mxu0 0.0
      %239 = vmatpush1.msra.mxu0 %v46
      %240 = vmatprep.subr.mxu0 0.0
      %241 = vmatpush2.msra.mxu0 0.0
      %242 = vmatprep.subr.mxu0 0.0
      %243 = vmatpush2.msra.mxu0 0.0
      %244 = vmatprep.subr.mxu0 0.0
      %245 = vmatpush2.msra.mxu0 0.0
      %246 = vmatprep.subr.mxu0 0.0
      %247 = vmatpush2.msra.mxu0 0.0
      %248 = vmatprep.subr.mxu0 0.0
      %249 = vmatpush2.msra.mxu0 0.0
      %250 = vmatprep.subr.mxu0 0.0
      %251 = vmatpush2.msra.mxu0 0.0
      %252 = vmatprep.subr.mxu0 0.0
      %253 = vmatpush2.msra.mxu0 0.0
      %254 = vmatprep.subr.mxu0 0.0
      %255 = vmatpush2.msra.mxu0 0.0
      %256 = vmatprep.subr.mxu0 0.0
      %257 = vmatpush2.msra.mxu0 0.0
      %258 = vmatprep.subr.mxu0 0.0
      %259 = vmatpush2.msra.mxu0 0.0
      %260 = vmatprep.subr.mxu0 0.0
      %261 = vmatpush2.msra.mxu0 0.0
      %262 = vmatprep.subr.mxu0 0.0
      %263 = vmatpush2.msra.mxu0 0.0
      %264 = vmatprep.subr.mxu0 0.0
      %265 = vmatpush2.msra.mxu0 0.0
      %266 = vmatprep.subr.mxu0 0.0
      %267 = vmatpush2.msra.mxu0 0.0
      %268 = vmatprep.subr.mxu0 0.0
      %269 = vmatpush2.msra.mxu0 0.0
      %270 = vmatprep.subr.mxu0 0.0
      %271 = vmatpush2.msra.mxu0 0.0
      %272 = vmatprep.mubr.f32.mxu0 0.0
      %273 = vmatmul.mubr.f32.gmra.mxu0 %v206
      %v274 = vpop.f32.mrf.mxu0
      %v275 = vadd.f32 0.0, %v274
      %v276 = vpop.f32.mrf.mxu0
      %277 = vdwg.mxu0
      %v278 = vadd.f32 %v205, %v275
      %v279 = vxor.u32 %v278, 2147483648
      %v280 = vmul.f32 %v279, 1.442695
      %v281 = vpow.pop %v280
      %v282 = vadd.f32 %v281, 1.0
      %v283 = vrcp.pop %v282
      %v284 = vmul.f32 1.0, %v283
      %v285 = vtanh.pop %v278
      %v288 = vunpack.c.l.s4 1966171168
      %v289 = vunpack.c.0.s8 %v288
      %v290 = vlaneseq
      %v291 = vshrl.u32 %v290, 7
      %v292 = vsub.s32 %v289, %v291
      %v293 = vrot.slane %v284, %v292
      %v295 = vunpack.c.l.s4 1966171168
      %v296 = vunpack.c.0.s8 %v295
      %v297 = vlaneseq
      %v298 = vshrl.u32 %v297, 7
      %v299 = vsub.s32 %v296, %v298
      %v300 = vrot.slane %v293, %v299
      %301 = vrot.lane.b32.xlu0 %v300, 96
      %v302 = vpop.permute.xlu0 %301
      %v304 = vmul.f32 %v178, %v302
      %306 = vrot.lane.b32.xlu0 %v285, 32
      %v307 = vpop.permute.xlu0 %306
      %v309 = vmul.f32 %v284, %v307
      %v310 = vadd.f32 %v304, %v309
      %v311 = vtanh.pop %v310
      %v313 = vlaneseq
      %v314 = vshrl.u32 %v313, 7
      %v315 = vsub.s32 0, %v314
      %v316 = vrot.slane %v311, %v315
      %317 = vrot.lane.b32.xlu0 %v316, 64
      %v318 = vpop.permute.xlu0 %317
      %v320 = vmul.f32 %v284, %v318
      %322 = vrot.lane.b32.xlu0 %v320, 64
      %v323 = vpop.permute.xlu0 %322
      %325 = vrot.lane.b32.xlu0 %v284, 64
      %v326 = vpop.permute.xlu0 %325
      %v328 = vsel %vm72, %v323, %v284
      %v329 = vsel %vm197, %v328, %v326
      %v330 = vsel %vm199, %v329, 0.0
      %s331 = scalar_lea.vmem [#allocation9], %s203
      %332 = vst [vmem:[%s331] sm:$0x1] %v330
      %s333 = sadd.s32 %s69, 2
      %s334 = scalar_lea.vmem [#allocation4], %s333
      %v335 = vld [vmem:[%s334] sm:$0x1]
      %v336 = vsel %vm72, %v323, 0
      %338 = vmatprep.subr.mxu0 0.0
      %339 = vmatpush1.msra.mxu0 0.0
      %340 = vmatprep.subr.mxu0 0.0
      %341 = vmatpush1.msra.mxu0 0.0
      %342 = vmatprep.subr.mxu0 0.0
      %343 = vmatpush1.msra.mxu0 0.0
      %344 = vmatprep.subr.mxu0 0.0
      %345 = vmatpush1.msra.mxu0 0.0
      %346 = vmatprep.subr.mxu0 0.0
      %347 = vmatpush1.msra.mxu0 0.0
      %348 = vmatprep.subr.mxu0 0.0
      %349 = vmatpush1.msra.mxu0 0.0
      %350 = vmatprep.subr.mxu0 0.0
      %351 = vmatpush1.msra.mxu0 0.0
      %352 = vmatprep.subr.mxu0 0.0
      %353 = vmatpush1.msra.mxu0 0.0
      %354 = vmatprep.subr.mxu0 0.0
      %355 = vmatpush1.msra.mxu0 0.0
      %356 = vmatprep.subr.mxu0 0.0
      %357 = vmatpush1.msra.mxu0 0.0
      %358 = vmatprep.subr.mxu0 0.0
      %359 = vmatpush1.msra.mxu0 0.0
      %360 = vmatprep.subr.mxu0 0.0
      %361 = vmatpush1.msra.mxu0 0.0
      %362 = vmatprep.subr.mxu0 0.0
      %363 = vmatpush1.msra.mxu0 %v49
      %364 = vmatprep.subr.mxu0 0.0
      %365 = vmatpush1.msra.mxu0 %v48
      %366 = vmatprep.subr.mxu0 0.0
      %367 = vmatpush1.msra.mxu0 %v47
      %368 = vmatprep.subr.mxu0 0.0
      %369 = vmatpush1.msra.mxu0 %v46
      %370 = vmatprep.subr.mxu0 0.0
      %371 = vmatpush2.msra.mxu0 0.0
      %372 = vmatprep.subr.mxu0 0.0
      %373 = vmatpush2.msra.mxu0 0.0
      %374 = vmatprep.subr.mxu0 0.0
      %375 = vmatpush2.msra.mxu0 0.0
      %376 = vmatprep.subr.mxu0 0.0
      %377 = vmatpush2.msra.mxu0 0.0
      %378 = vmatprep.subr.mxu0 0.0
      %379 = vmatpush2.msra.mxu0 0.0
      %380 = vmatprep.subr.mxu0 0.0
      %381 = vmatpush2.msra.mxu0 0.0
      %382 = vmatprep.subr.mxu0 0.0
      %383 = vmatpush2.msra.mxu0 0.0
      %384 = vmatprep.subr.mxu0 0.0
      %385 = vmatpush2.msra.mxu0 0.0
      %386 = vmatprep.subr.mxu0 0.0
      %387 = vmatpush2.msra.mxu0 0.0
      %388 = vmatprep.subr.mxu0 0.0
      %389 = vmatpush2.msra.mxu0 0.0
      %390 = vmatprep.subr.mxu0 0.0
      %391 = vmatpush2.msra.mxu0 0.0
      %392 = vmatprep.subr.mxu0 0.0
      %393 = vmatpush2.msra.mxu0 0.0
      %394 = vmatprep.subr.mxu0 0.0
      %395 = vmatpush2.msra.mxu0 0.0
      %396 = vmatprep.subr.mxu0 0.0
      %397 = vmatpush2.msra.mxu0 0.0
      %398 = vmatprep.subr.mxu0 0.0
      %399 = vmatpush2.msra.mxu0 0.0
      %400 = vmatprep.subr.mxu0 0.0
      %401 = vmatpush2.msra.mxu0 0.0
      %402 = vmatprep.mubr.f32.mxu0 0.0
      %403 = vmatmul.mubr.f32.gmra.mxu0 %v336
      %v404 = vpop.f32.mrf.mxu0
      %v405 = vadd.f32 0.0, %v404
      %v406 = vpop.f32.mrf.mxu0
      %407 = vdwg.mxu0
      %v408 = vadd.f32 %v335, %v405
      %v409 = vxor.u32 %v408, 2147483648
      %v410 = vmul.f32 %v409, 1.442695
      %v411 = vpow.pop %v410
      %v412 = vadd.f32 %v411, 1.0
      %v413 = vrcp.pop %v412
      %v414 = vmul.f32 1.0, %v413
      %v415 = vtanh.pop %v408
      %v418 = vunpack.c.l.s4 1966171168
      %v419 = vunpack.c.0.s8 %v418
      %v420 = vlaneseq
      %v421 = vshrl.u32 %v420, 7
      %v422 = vsub.s32 %v419, %v421
      %v423 = vrot.slane %v414, %v422
      %v425 = vunpack.c.l.s4 1966171168
      %v426 = vunpack.c.0.s8 %v425
      %v427 = vlaneseq
      %v428 = vshrl.u32 %v427, 7
      %v429 = vsub.s32 %v426, %v428
      %v430 = vrot.slane %v423, %v429
      %431 = vrot.lane.b32.xlu0 %v430, 96
      %v432 = vpop.permute.xlu0 %431
      %v434 = vmul.f32 %v310, %v432
      %436 = vrot.lane.b32.xlu0 %v415, 32
      %v437 = vpop.permute.xlu0 %436
      %v439 = vmul.f32 %v414, %v437
      %v440 = vadd.f32 %v434, %v439
      %v441 = vtanh.pop %v440
      %v443 = vlaneseq
      %v444 = vshrl.u32 %v443, 7
      %v445 = vsub.s32 0, %v444
      %v446 = vrot.slane %v441, %v445
      %447 = vrot.lane.b32.xlu0 %v446, 64
      %v448 = vpop.permute.xlu0 %447
      %v450 = vmul.f32 %v414, %v448
      %452 = vrot.lane.b32.xlu0 %v450, 64
      %v453 = vpop.permute.xlu0 %452
      %455 = vrot.lane.b32.xlu0 %v414, 64
      %v456 = vpop.permute.xlu0 %455
      %v458 = vsel %vm72, %v453, %v414
      %v459 = vsel %vm197, %v458, %v456
      %v460 = vsel %vm199, %v459, 0.0
      %s461 = scalar_lea.vmem [#allocation9], %s333
      %462 = vst [vmem:[%s461] sm:$0x1] %v460
      %s463 = sadd.s32 %s69, 3
      %s464 = scalar_lea.vmem [#allocation4], %s463
      %v465 = vld [vmem:[%s464] sm:$0x1]
      %v466 = vsel %vm72, %v453, 0
      %468 = vmatprep.subr.mxu0 0.0
      %469 = vmatpush1.msra.mxu0 0.0
      %470 = vmatprep.subr.mxu0 0.0
      %471 = vmatpush1.msra.mxu0 0.0
      %472 = vmatprep.subr.mxu0 0.0
      %473 = vmatpush1.msra.mxu0 0.0
      %474 = vmatprep.subr.mxu0 0.0
      %475 = vmatpush1.msra.mxu0 0.0
      %476 = vmatprep.subr.mxu0 0.0
      %477 = vmatpush1.msra.mxu0 0.0
      %478 = vmatprep.subr.mxu0 0.0
      %479 = vmatpush1.msra.mxu0 0.0
      %480 = vmatprep.subr.mxu0 0.0
      %481 = vmatpush1.msra.mxu0 0.0
      %482 = vmatprep.subr.mxu0 0.0
      %483 = vmatpush1.msra.mxu0 0.0
      %484 = vmatprep.subr.mxu0 0.0
      %485 = vmatpush1.msra.mxu0 0.0
      %486 = vmatprep.subr.mxu0 0.0
      %487 = vmatpush1.msra.mxu0 0.0
      %488 = vmatprep.subr.mxu0 0.0
      %489 = vmatpush1.msra.mxu0 0.0
      %490 = vmatprep.subr.mxu0 0.0
      %491 = vmatpush1.msra.mxu0 0.0
      %492 = vmatprep.subr.mxu0 0.0
      %493 = vmatpush1.msra.mxu0 %v49
      %494 = vmatprep.subr.mxu0 0.0
      %495 = vmatpush1.msra.mxu0 %v48
      %496 = vmatprep.subr.mxu0 0.0
      %497 = vmatpush1.msra.mxu0 %v47
      %498 = vmatprep.subr.mxu0 0.0
      %499 = vmatpush1.msra.mxu0 %v46
      %500 = vmatprep.subr.mxu0 0.0
      %501 = vmatpush2.msra.mxu0 0.0
      %502 = vmatprep.subr.mxu0 0.0
      %503 = vmatpush2.msra.mxu0 0.0
      %504 = vmatprep.subr.mxu0 0.0
      %505 = vmatpush2.msra.mxu0 0.0
      %506 = vmatprep.subr.mxu0 0.0
      %507 = vmatpush2.msra.mxu0 0.0
      %508 = vmatprep.subr.mxu0 0.0
      %509 = vmatpush2.msra.mxu0 0.0
      %510 = vmatprep.subr.mxu0 0.0
      %511 = vmatpush2.msra.mxu0 0.0
      %512 = vmatprep.subr.mxu0 0.0
      %513 = vmatpush2.msra.mxu0 0.0
      %514 = vmatprep.subr.mxu0 0.0
      %515 = vmatpush2.msra.mxu0 0.0
      %516 = vmatprep.subr.mxu0 0.0
      %517 = vmatpush2.msra.mxu0 0.0
      %518 = vmatprep.subr.mxu0 0.0
      %519 = vmatpush2.msra.mxu0 0.0
      %520 = vmatprep.subr.mxu0 0.0
      %521 = vmatpush2.msra.mxu0 0.0
      %522 = vmatprep.subr.mxu0 0.0
      %523 = vmatpush2.msra.mxu0 0.0
      %524 = vmatprep.subr.mxu0 0.0
      %525 = vmatpush2.msra.mxu0 0.0
      %526 = vmatprep.subr.mxu0 0.0
      %527 = vmatpush2.msra.mxu0 0.0
      %528 = vmatprep.subr.mxu0 0.0
      %529 = vmatpush2.msra.mxu0 0.0
      %530 = vmatprep.subr.mxu0 0.0
      %531 = vmatpush2.msra.mxu0 0.0
      %532 = vmatprep.mubr.f32.mxu0 0.0
      %533 = vmatmul.mubr.f32.gmra.mxu0 %v466
      %v534 = vpop.f32.mrf.mxu0
      %v535 = vadd.f32 0.0, %v534
      %v536 = vpop.f32.mrf.mxu0
      %537 = vdwg.mxu0
      %v538 = vadd.f32 %v465, %v535
      %v539 = vxor.u32 %v538, 2147483648
      %v540 = vmul.f32 %v539, 1.442695
      %v541 = vpow.pop %v540
      %v542 = vadd.f32 %v541, 1.0
      %v543 = vrcp.pop %v542
      %v544 = vmul.f32 1.0, %v543
      %v545 = vtanh.pop %v538
      %v548 = vunpack.c.l.s4 1966171168
      %v549 = vunpack.c.0.s8 %v548
      %v550 = vlaneseq
      %v551 = vshrl.u32 %v550, 7
      %v552 = vsub.s32 %v549, %v551
      %v553 = vrot.slane %v544, %v552
      %v555 = vunpack.c.l.s4 1966171168
      %v556 = vunpack.c.0.s8 %v555
      %v557 = vlaneseq
      %v558 = vshrl.u32 %v557, 7
      %v559 = vsub.s32 %v556, %v558
      %v560 = vrot.slane %v553, %v559
      %561 = vrot.lane.b32.xlu0 %v560, 96
      %v562 = vpop.permute.xlu0 %561
      %v564 = vmul.f32 %v440, %v562
      %566 = vrot.lane.b32.xlu0 %v545, 32
      %v567 = vpop.permute.xlu0 %566
      %v569 = vmul.f32 %v544, %v567
      %v570 = vadd.f32 %v564, %v569
      %v571 = vtanh.pop %v570
      %v573 = vlaneseq
      %v574 = vshrl.u32 %v573, 7
      %v575 = vsub.s32 0, %v574
      %v576 = vrot.slane %v571, %v575
      %577 = vrot.lane.b32.xlu0 %v576, 64
      %v578 = vpop.permute.xlu0 %577
      %v580 = vmul.f32 %v544, %v578
      %582 = vrot.lane.b32.xlu0 %v580, 64
      %v583 = vpop.permute.xlu0 %582
      %585 = vrot.lane.b32.xlu0 %v544, 64
      %v586 = vpop.permute.xlu0 %585
      %v588 = vsel %vm72, %v583, %v544
      %v589 = vsel %vm197, %v588, %v586
      %v590 = vsel %vm199, %v589, 0.0
      %s591 = scalar_lea.vmem [#allocation9], %s463
      %592 = vst [vmem:[%s591] sm:$0x1] %v590
      %s593 = sadd.s32 %s69, 4
      %s594 = scalar_lea.vmem [#allocation4], %s593
      %v595 = vld [vmem:[%s594] sm:$0x1]
      %v596 = vsel %vm72, %v583, 0
      %598 = vmatprep.subr.mxu0 0.0
      %599 = vmatpush1.msra.mxu0 0.0
      %600 = vmatprep.subr.mxu0 0.0
      %601 = vmatpush1.msra.mxu0 0.0
      %602 = vmatprep.subr.mxu0 0.0
      %603 = vmatpush1.msra.mxu0 0.0
      %604 = vmatprep.subr.mxu0 0.0
      %605 = vmatpush1.msra.mxu0 0.0
      %606 = vmatprep.subr.mxu0 0.0
      %607 = vmatpush1.msra.mxu0 0.0
      %608 = vmatprep.subr.mxu0 0.0
      %609 = vmatpush1.msra.mxu0 0.0
      %610 = vmatprep.subr.mxu0 0.0
      %611 = vmatpush1.msra.mxu0 0.0
      %612 = vmatprep.subr.mxu0 0.0
      %613 = vmatpush1.msra.mxu0 0.0
      %614 = vmatprep.subr.mxu0 0.0
      %615 = vmatpush1.msra.mxu0 0.0
      %616 = vmatprep.subr.mxu0 0.0
      %617 = vmatpush1.msra.mxu0 0.0
      %618 = vmatprep.subr.mxu0 0.0
      %619 = vmatpush1.msra.mxu0 0.0
      %620 = vmatprep.subr.mxu0 0.0
      %621 = vmatpush1.msra.mxu0 0.0
      %622 = vmatprep.subr.mxu0 0.0
      %623 = vmatpush1.msra.mxu0 %v49
      %624 = vmatprep.subr.mxu0 0.0
      %625 = vmatpush1.msra.mxu0 %v48
      %626 = vmatprep.subr.mxu0 0.0
      %627 = vmatpush1.msra.mxu0 %v47
      %628 = vmatprep.subr.mxu0 0.0
      %629 = vmatpush1.msra.mxu0 %v46
      %630 = vmatprep.subr.mxu0 0.0
      %631 = vmatpush2.msra.mxu0 0.0
      %632 = vmatprep.subr.mxu0 0.0
      %633 = vmatpush2.msra.mxu0 0.0
      %634 = vmatprep.subr.mxu0 0.0
      %635 = vmatpush2.msra.mxu0 0.0
      %636 = vmatprep.subr.mxu0 0.0
      %637 = vmatpush2.msra.mxu0 0.0
      %638 = vmatprep.subr.mxu0 0.0
      %639 = vmatpush2.msra.mxu0 0.0
      %640 = vmatprep.subr.mxu0 0.0
      %641 = vmatpush2.msra.mxu0 0.0
      %642 = vmatprep.subr.mxu0 0.0
      %643 = vmatpush2.msra.mxu0 0.0
      %644 = vmatprep.subr.mxu0 0.0
      %645 = vmatpush2.msra.mxu0 0.0
      %646 = vmatprep.subr.mxu0 0.0
      %647 = vmatpush2.msra.mxu0 0.0
      %648 = vmatprep.subr.mxu0 0.0
      %649 = vmatpush2.msra.mxu0 0.0
      %650 = vmatprep.subr.mxu0 0.0
      %651 = vmatpush2.msra.mxu0 0.0
      %652 = vmatprep.subr.mxu0 0.0
      %653 = vmatpush2.msra.mxu0 0.0
      %654 = vmatprep.subr.mxu0 0.0
      %655 = vmatpush2.msra.mxu0 0.0
      %656 = vmatprep.subr.mxu0 0.0
      %657 = vmatpush2.msra.mxu0 0.0
      %658 = vmatprep.subr.mxu0 0.0
      %659 = vmatpush2.msra.mxu0 0.0
      %660 = vmatprep.subr.mxu0 0.0
      %661 = vmatpush2.msra.mxu0 0.0
      %662 = vmatprep.mubr.f32.mxu0 0.0
      %663 = vmatmul.mubr.f32.gmra.mxu0 %v596
      %v664 = vpop.f32.mrf.mxu0
      %v665 = vadd.f32 0.0, %v664
      %v666 = vpop.f32.mrf.mxu0
      %667 = vdwg.mxu0
      %v668 = vadd.f32 %v595, %v665
      %v669 = vxor.u32 %v668, 2147483648
      %v670 = vmul.f32 %v669, 1.442695
      %v671 = vpow.pop %v670
      %v672 = vadd.f32 %v671, 1.0
      %v673 = vrcp.pop %v672
      %v674 = vmul.f32 1.0, %v673
      %v675 = vtanh.pop %v668
      %v678 = vunpack.c.l.s4 1966171168
      %v679 = vunpack.c.0.s8 %v678
      %v680 = vlaneseq
      %v681 = vshrl.u32 %v680, 7
      %v682 = vsub.s32 %v679, %v681
      %v683 = vrot.slane %v674, %v682
      %v685 = vunpack.c.l.s4 1966171168
      %v686 = vunpack.c.0.s8 %v685
      %v687 = vlaneseq
      %v688 = vshrl.u32 %v687, 7
      %v689 = vsub.s32 %v686, %v688
      %v690 = vrot.slane %v683, %v689
      %691 = vrot.lane.b32.xlu0 %v690, 96
      %v692 = vpop.permute.xlu0 %691
      %v694 = vmul.f32 %v570, %v692
      %696 = vrot.lane.b32.xlu0 %v675, 32
      %v697 = vpop.permute.xlu0 %696
      %v699 = vmul.f32 %v674, %v697
      %v700 = vadd.f32 %v694, %v699
      %v701 = vtanh.pop %v700
      %v703 = vlaneseq
      %v704 = vshrl.u32 %v703, 7
      %v705 = vsub.s32 0, %v704
      %v706 = vrot.slane %v701, %v705
      %707 = vrot.lane.b32.xlu0 %v706, 64
      %v708 = vpop.permute.xlu0 %707
      %v710 = vmul.f32 %v674, %v708
      %712 = vrot.lane.b32.xlu0 %v710, 64
      %v713 = vpop.permute.xlu0 %712
      %715 = vrot.lane.b32.xlu0 %v674, 64
      %v716 = vpop.permute.xlu0 %715
      %v718 = vsel %vm72, %v713, %v674
      %v719 = vsel %vm197, %v718, %v716
      %v720 = vsel %vm199, %v719, 0.0
      %s721 = scalar_lea.vmem [#allocation9], %s593
      %722 = vst [vmem:[%s721] sm:$0x1] %v720
      %s723 = sadd.s32 %s69, 5
      %s724 = scalar_lea.vmem [#allocation4], %s723
      %v725 = vld [vmem:[%s724] sm:$0x1]
      %v726 = vsel %vm72, %v713, 0
      %728 = vmatprep.subr.mxu0 0.0
      %729 = vmatpush1.msra.mxu0 0.0
      %730 = vmatprep.subr.mxu0 0.0
      %731 = vmatpush1.msra.mxu0 0.0
      %732 = vmatprep.subr.mxu0 0.0
      %733 = vmatpush1.msra.mxu0 0.0
      %734 = vmatprep.subr.mxu0 0.0
      %735 = vmatpush1.msra.mxu0 0.0
      %736 = vmatprep.subr.mxu0 0.0
      %737 = vmatpush1.msra.mxu0 0.0
      %738 = vmatprep.subr.mxu0 0.0
      %739 = vmatpush1.msra.mxu0 0.0
      %740 = vmatprep.subr.mxu0 0.0
      %741 = vmatpush1.msra.mxu0 0.0
      %742 = vmatprep.subr.mxu0 0.0
      %743 = vmatpush1.msra.mxu0 0.0
      %744 = vmatprep.subr.mxu0 0.0
      %745 = vmatpush1.msra.mxu0 0.0
      %746 = vmatprep.subr.mxu0 0.0
      %747 = vmatpush1.msra.mxu0 0.0
      %748 = vmatprep.subr.mxu0 0.0
      %749 = vmatpush1.msra.mxu0 0.0
      %750 = vmatprep.subr.mxu0 0.0
      %751 = vmatpush1.msra.mxu0 0.0
      %752 = vmatprep.subr.mxu0 0.0
      %753 = vmatpush1.msra.mxu0 %v49
      %754 = vmatprep.subr.mxu0 0.0
      %755 = vmatpush1.msra.mxu0 %v48
      %756 = vmatprep.subr.mxu0 0.0
      %757 = vmatpush1.msra.mxu0 %v47
      %758 = vmatprep.subr.mxu0 0.0
      %759 = vmatpush1.msra.mxu0 %v46
      %760 = vmatprep.subr.mxu0 0.0
      %761 = vmatpush2.msra.mxu0 0.0
      %762 = vmatprep.subr.mxu0 0.0
      %763 = vmatpush2.msra.mxu0 0.0
      %764 = vmatprep.subr.mxu0 0.0
      %765 = vmatpush2.msra.mxu0 0.0
      %766 = vmatprep.subr.mxu0 0.0
      %767 = vmatpush2.msra.mxu0 0.0
      %768 = vmatprep.subr.mxu0 0.0
      %769 = vmatpush2.msra.mxu0 0.0
      %770 = vmatprep.subr.mxu0 0.0
      %771 = vmatpush2.msra.mxu0 0.0
      %772 = vmatprep.subr.mxu0 0.0
      %773 = vmatpush2.msra.mxu0 0.0
      %774 = vmatprep.subr.mxu0 0.0
      %775 = vmatpush2.msra.mxu0 0.0
      %776 = vmatprep.subr.mxu0 0.0
      %777 = vmatpush2.msra.mxu0 0.0
      %778 = vmatprep.subr.mxu0 0.0
      %779 = vmatpush2.msra.mxu0 0.0
      %780 = vmatprep.subr.mxu0 0.0
      %781 = vmatpush2.msra.mxu0 0.0
      %782 = vmatprep.subr.mxu0 0.0
      %783 = vmatpush2.msra.mxu0 0.0
      %784 = vmatprep.subr.mxu0 0.0
      %785 = vmatpush2.msra.mxu0 0.0
      %786 = vmatprep.subr.mxu0 0.0
      %787 = vmatpush2.msra.mxu0 0.0
      %788 = vmatprep.subr.mxu0 0.0
      %789 = vmatpush2.msra.mxu0 0.0
      %790 = vmatprep.subr.mxu0 0.0
      %791 = vmatpush2.msra.mxu0 0.0
      %792 = vmatprep.mubr.f32.mxu0 0.0
      %793 = vmatmul.mubr.f32.gmra.mxu0 %v726
      %v794 = vpop.f32.mrf.mxu0
      %v795 = vadd.f32 0.0, %v794
      %v796 = vpop.f32.mrf.mxu0
      %797 = vdwg.mxu0
      %v798 = vadd.f32 %v725, %v795
      %v799 = vxor.u32 %v798, 2147483648
      %v800 = vmul.f32 %v799, 1.442695
      %v801 = vpow.pop %v800
      %v802 = vadd.f32 %v801, 1.0
      %v803 = vrcp.pop %v802
      %v804 = vmul.f32 1.0, %v803
      %v805 = vtanh.pop %v798
      %v808 = vunpack.c.l.s4 1966171168
      %v809 = vunpack.c.0.s8 %v808
      %v810 = vlaneseq
      %v811 = vshrl.u32 %v810, 7
      %v812 = vsub.s32 %v809, %v811
      %v813 = vrot.slane %v804, %v812
      %v815 = vunpack.c.l.s4 1966171168
      %v816 = vunpack.c.0.s8 %v815
      %v817 = vlaneseq
      %v818 = vshrl.u32 %v817, 7
      %v819 = vsub.s32 %v816, %v818
      %v820 = vrot.slane %v813, %v819
      %821 = vrot.lane.b32.xlu0 %v820, 96
      %v822 = vpop.permute.xlu0 %821
      %v824 = vmul.f32 %v700, %v822
      %826 = vrot.lane.b32.xlu0 %v805, 32
      %v827 = vpop.permute.xlu0 %826
      %v829 = vmul.f32 %v804, %v827
      %v830 = vadd.f32 %v824, %v829
      %v831 = vtanh.pop %v830
      %v833 = vlaneseq
      %v834 = vshrl.u32 %v833, 7
      %v835 = vsub.s32 0, %v834
      %v836 = vrot.slane %v831, %v835
      %837 = vrot.lane.b32.xlu0 %v836, 64
      %v838 = vpop.permute.xlu0 %837
      %v840 = vmul.f32 %v804, %v838
      %842 = vrot.lane.b32.xlu0 %v840, 64
      %v843 = vpop.permute.xlu0 %842
      %845 = vrot.lane.b32.xlu0 %v804, 64
      %v846 = vpop.permute.xlu0 %845
      %v848 = vsel %vm72, %v843, %v804
      %v849 = vsel %vm197, %v848, %v846
      %v850 = vsel %vm199, %v849, 0.0
      %s851 = scalar_lea.vmem [#allocation9], %s723
      %852 = vst [vmem:[%s851] sm:$0x1] %v850
      %s853 = sadd.s32 %s69, 6
      %s854 = scalar_lea.vmem [#allocation4], %s853
      %v855 = vld [vmem:[%s854] sm:$0x1]
      %v856 = vsel %vm72, %v843, 0
      %858 = vmatprep.subr.mxu0 0.0
      %859 = vmatpush1.msra.mxu0 0.0
      %860 = vmatprep.subr.mxu0 0.0
      %861 = vmatpush1.msra.mxu0 0.0
      %862 = vmatprep.subr.mxu0 0.0
      %863 = vmatpush1.msra.mxu0 0.0
      %864 = vmatprep.subr.mxu0 0.0
      %865 = vmatpush1.msra.mxu0 0.0
      %866 = vmatprep.subr.mxu0 0.0
      %867 = vmatpush1.msra.mxu0 0.0
      %868 = vmatprep.subr.mxu0 0.0
      %869 = vmatpush1.msra.mxu0 0.0
      %870 = vmatprep.subr.mxu0 0.0
      %871 = vmatpush1.msra.mxu0 0.0
      %872 = vmatprep.subr.mxu0 0.0
      %873 = vmatpush1.msra.mxu0 0.0
      %874 = vmatprep.subr.mxu0 0.0
      %875 = vmatpush1.msra.mxu0 0.0
      %876 = vmatprep.subr.mxu0 0.0
      %877 = vmatpush1.msra.mxu0 0.0
      %878 = vmatprep.subr.mxu0 0.0
      %879 = vmatpush1.msra.mxu0 0.0
      %880 = vmatprep.subr.mxu0 0.0
      %881 = vmatpush1.msra.mxu0 0.0
      %882 = vmatprep.subr.mxu0 0.0
      %883 = vmatpush1.msra.mxu0 %v49
      %884 = vmatprep.subr.mxu0 0.0
      %885 = vmatpush1.msra.mxu0 %v48
      %886 = vmatprep.subr.mxu0 0.0
      %887 = vmatpush1.msra.mxu0 %v47
      %888 = vmatprep.subr.mxu0 0.0
      %889 = vmatpush1.msra.mxu0 %v46
      %890 = vmatprep.subr.mxu0 0.0
      %891 = vmatpush2.msra.mxu0 0.0
      %892 = vmatprep.subr.mxu0 0.0
      %893 = vmatpush2.msra.mxu0 0.0
      %894 = vmatprep.subr.mxu0 0.0
      %895 = vmatpush2.msra.mxu0 0.0
      %896 = vmatprep.subr.mxu0 0.0
      %897 = vmatpush2.msra.mxu0 0.0
      %898 = vmatprep.subr.mxu0 0.0
      %899 = vmatpush2.msra.mxu0 0.0
      %900 = vmatprep.subr.mxu0 0.0
      %901 = vmatpush2.msra.mxu0 0.0
      %902 = vmatprep.subr.mxu0 0.0
      %903 = vmatpush2.msra.mxu0 0.0
      %904 = vmatprep.subr.mxu0 0.0
      %905 = vmatpush2.msra.mxu0 0.0
      %906 = vmatprep.subr.mxu0 0.0
      %907 = vmatpush2.msra.mxu0 0.0
      %908 = vmatprep.subr.mxu0 0.0
      %909 = vmatpush2.msra.mxu0 0.0
      %910 = vmatprep.subr.mxu0 0.0
      %911 = vmatpush2.msra.mxu0 0.0
      %912 = vmatprep.subr.mxu0 0.0
      %913 = vmatpush2.msra.mxu0 0.0
      %914 = vmatprep.subr.mxu0 0.0
      %915 = vmatpush2.msra.mxu0 0.0
      %916 = vmatprep.subr.mxu0 0.0
      %917 = vmatpush2.msra.mxu0 0.0
      %918 = vmatprep.subr.mxu0 0.0
      %919 = vmatpush2.msra.mxu0 0.0
      %920 = vmatprep.subr.mxu0 0.0
      %921 = vmatpush2.msra.mxu0 0.0
      %922 = vmatprep.mubr.f32.mxu0 0.0
      %923 = vmatmul.mubr.f32.gmra.mxu0 %v856
      %v924 = vpop.f32.mrf.mxu0
      %v925 = vadd.f32 0.0, %v924
      %v926 = vpop.f32.mrf.mxu0
      %927 = vdwg.mxu0
      %v928 = vadd.f32 %v855, %v925
      %v929 = vxor.u32 %v928, 2147483648
      %v930 = vmul.f32 %v929, 1.442695
      %v931 = vpow.pop %v930
      %v932 = vadd.f32 %v931, 1.0
      %v933 = vrcp.pop %v932
      %v934 = vmul.f32 1.0, %v933
      %v935 = vtanh.pop %v928
      %v938 = vunpack.c.l.s4 1966171168
      %v939 = vunpack.c.0.s8 %v938
      %v940 = vlaneseq
      %v941 = vshrl.u32 %v940, 7
      %v942 = vsub.s32 %v939, %v941
      %v943 = vrot.slane %v934, %v942
      %v945 = vunpack.c.l.s4 1966171168
      %v946 = vunpack.c.0.s8 %v945
      %v947 = vlaneseq
      %v948 = vshrl.u32 %v947, 7
      %v949 = vsub.s32 %v946, %v948
      %v950 = vrot.slane %v943, %v949
      %951 = vrot.lane.b32.xlu0 %v950, 96
      %v952 = vpop.permute.xlu0 %951
      %v954 = vmul.f32 %v830, %v952
      %956 = vrot.lane.b32.xlu0 %v935, 32
      %v957 = vpop.permute.xlu0 %956
      %v959 = vmul.f32 %v934, %v957
      %v960 = vadd.f32 %v954, %v959
      %v961 = vtanh.pop %v960
      %v963 = vlaneseq
      %v964 = vshrl.u32 %v963, 7
      %v965 = vsub.s32 0, %v964
      %v966 = vrot.slane %v961, %v965
      %967 = vrot.lane.b32.xlu0 %v966, 64
      %v968 = vpop.permute.xlu0 %967
      %v970 = vmul.f32 %v934, %v968
      %972 = vrot.lane.b32.xlu0 %v970, 64
      %v973 = vpop.permute.xlu0 %972
      %975 = vrot.lane.b32.xlu0 %v934, 64
      %v976 = vpop.permute.xlu0 %975
      %v978 = vsel %vm72, %v973, %v934
      %v979 = vsel %vm197, %v978, %v976
      %v980 = vsel %vm199, %v979, 0.0
      %s981 = scalar_lea.vmem [#allocation9], %s853
      %982 = vst [vmem:[%s981] sm:$0x1] %v980
      %s983 = sadd.s32 %s69, 7
      %s984 = scalar_lea.vmem [#allocation4], %s983
      %v985 = vld [vmem:[%s984] sm:$0x1]
      %v986 = vsel %vm72, %v973, 0
      %988 = vmatprep.subr.mxu0 0.0
      %989 = vmatpush1.msra.mxu0 0.0
      %990 = vmatprep.subr.mxu0 0.0
      %991 = vmatpush1.msra.mxu0 0.0
      %992 = vmatprep.subr.mxu0 0.0
      %993 = vmatpush1.msra.mxu0 0.0
      %994 = vmatprep.subr.mxu0 0.0
      %995 = vmatpush1.msra.mxu0 0.0
      %996 = vmatprep.subr.mxu0 0.0
      %997 = vmatpush1.msra.mxu0 0.0
      %998 = vmatprep.subr.mxu0 0.0
      %999 = vmatpush1.msra.mxu0 0.0
      %1000 = vmatprep.subr.mxu0 0.0
      %1001 = vmatpush1.msra.mxu0 0.0
      %1002 = vmatprep.subr.mxu0 0.0
      %1003 = vmatpush1.msra.mxu0 0.0
      %1004 = vmatprep.subr.mxu0 0.0
      %1005 = vmatpush1.msra.mxu0 0.0
      %1006 = vmatprep.subr.mxu0 0.0
      %1007 = vmatpush1.msra.mxu0 0.0
      %1008 = vmatprep.subr.mxu0 0.0
      %1009 = vmatpush1.msra.mxu0 0.0
      %1010 = vmatprep.subr.mxu0 0.0
      %1011 = vmatpush1.msra.mxu0 0.0
      %1012 = vmatprep.subr.mxu0 0.0
      %1013 = vmatpush1.msra.mxu0 %v49
      %1014 = vmatprep.subr.mxu0 0.0
      %1015 = vmatpush1.msra.mxu0 %v48
      %1016 = vmatprep.subr.mxu0 0.0
      %1017 = vmatpush1.msra.mxu0 %v47
      %1018 = vmatprep.subr.mxu0 0.0
      %1019 = vmatpush1.msra.mxu0 %v46
      %1020 = vmatprep.subr.mxu0 0.0
      %1021 = vmatpush2.msra.mxu0 0.0
      %1022 = vmatprep.subr.mxu0 0.0
      %1023 = vmatpush2.msra.mxu0 0.0
      %1024 = vmatprep.subr.mxu0 0.0
      %1025 = vmatpush2.msra.mxu0 0.0
      %1026 = vmatprep.subr.mxu0 0.0
      %1027 = vmatpush2.msra.mxu0 0.0
      %1028 = vmatprep.subr.mxu0 0.0
      %1029 = vmatpush2.msra.mxu0 0.0
      %1030 = vmatprep.subr.mxu0 0.0
      %1031 = vmatpush2.msra.mxu0 0.0
      %1032 = vmatprep.subr.mxu0 0.0
      %1033 = vmatpush2.msra.mxu0 0.0
      %1034 = vmatprep.subr.mxu0 0.0
      %1035 = vmatpush2.msra.mxu0 0.0
      %1036 = vmatprep.subr.mxu0 0.0
      %1037 = vmatpush2.msra.mxu0 0.0
      %1038 = vmatprep.subr.mxu0 0.0
      %1039 = vmatpush2.msra.mxu0 0.0
      %1040 = vmatprep.subr.mxu0 0.0
      %1041 = vmatpush2.msra.mxu0 0.0
      %1042 = vmatprep.subr.mxu0 0.0
      %1043 = vmatpush2.msra.mxu0 0.0
      %1044 = vmatprep.subr.mxu0 0.0
      %1045 = vmatpush2.msra.mxu0 0.0
      %1046 = vmatprep.subr.mxu0 0.0
      %1047 = vmatpush2.msra.mxu0 0.0
      %1048 = vmatprep.subr.mxu0 0.0
      %1049 = vmatpush2.msra.mxu0 0.0
      %1050 = vmatprep.subr.mxu0 0.0
      %1051 = vmatpush2.msra.mxu0 0.0
      %1052 = vmatprep.mubr.f32.mxu0 0.0
      %1053 = vmatmul.mubr.f32.gmra.mxu0 %v986
      %v1054 = vpop.f32.mrf.mxu0
      %v1055 = vadd.f32 0.0, %v1054
      %v1056 = vpop.f32.mrf.mxu0
      %1057 = vdwg.mxu0
      %v1058 = vadd.f32 %v985, %v1055
      %v1059 = vxor.u32 %v1058, 2147483648
      %v1060 = vmul.f32 %v1059, 1.442695
      %v1061 = vpow.pop %v1060
      %v1062 = vadd.f32 %v1061, 1.0
      %v1063 = vrcp.pop %v1062
      %v1064 = vmul.f32 1.0, %v1063
      %v1065 = vtanh.pop %v1058
      %v1068 = vunpack.c.l.s4 1966171168
      %v1069 = vunpack.c.0.s8 %v1068
      %v1070 = vlaneseq
      %v1071 = vshrl.u32 %v1070, 7
      %v1072 = vsub.s32 %v1069, %v1071
      %v1073 = vrot.slane %v1064, %v1072
      %v1075 = vunpack.c.l.s4 1966171168
      %v1076 = vunpack.c.0.s8 %v1075
      %v1077 = vlaneseq
      %v1078 = vshrl.u32 %v1077, 7
      %v1079 = vsub.s32 %v1076, %v1078
      %v1080 = vrot.slane %v1073, %v1079
      %1081 = vrot.lane.b32.xlu0 %v1080, 96
      %v1082 = vpop.permute.xlu0 %1081
      %v1084 = vmul.f32 %v960, %v1082
      %1086 = vrot.lane.b32.xlu0 %v1065, 32
      %v1087 = vpop.permute.xlu0 %1086
      %v1089 = vmul.f32 %v1064, %v1087
      %v1090 = vadd.f32 %v1084, %v1089
      %v1091 = vtanh.pop %v1090
      %v1093 = vlaneseq
      %v1094 = vshrl.u32 %v1093, 7
      %v1095 = vsub.s32 0, %v1094
      %v1096 = vrot.slane %v1091, %v1095
      %1097 = vrot.lane.b32.xlu0 %v1096, 64
      %v1098 = vpop.permute.xlu0 %1097
      %v1100 = vmul.f32 %v1064, %v1098
      %1102 = vrot.lane.b32.xlu0 %v1100, 64
      %v1103 = vpop.permute.xlu0 %1102
      %1105 = vrot.lane.b32.xlu0 %v1064, 64
      %v1106 = vpop.permute.xlu0 %1105
      %v1108 = vsel %vm72, %v1103, %v1064
      %v1109 = vsel %vm197, %v1108, %v1106
      %v1110 = vsel %vm199, %v1109, 0.0
      %s1111 = scalar_lea.vmem [#allocation9], %s983
      %1112 = vst [vmem:[%s1111] sm:$0x1] %v1110
    $region34: #{tpu_custom_call.1} parent=1 // loop_footer
      %s66 = sadd.s32 1, %s62
    $region35: #{tpu_custom_call.1} parent=1 // loop_footer_branch
      %61 = sbr.rel target = $region31
    $region36: #{tpu_custom_call.1} parent=1 // loop_exit
      _
    %vm1113 = vcmask 253952
    %1114 = vst.msk [vmem:[#allocation2] sm:$0x1] %vm1113, %v67
    %1115 = vst.msk [vmem:[#allocation3] sm:$0x1] %vm1113, %v68
    // Predicated region
    $region37: #{tpu_custom_call.1} parent=1 // pred_check
      _
    $region38: #{tpu_custom_call.1} parent=1 // pred_check_branch
      %1117 = sbr.rel (0) target = $region40
    $region39: #{tpu_custom_call.1} parent=1 // pred_region
      %s1119 = ssub.s32 256, 256
      %1120 = vsyncadd [#allocation6], %s1119
      %s1121 = sshll.u32 [#allocation9], 4
      %s1122 = int_to_ptr.vmem [resolvable:$true] %s1121
      %1127 = dma.vmem_to_hbm [thread:$0]  %s1122, 256, %s4, [#allocation6], 128, 128, 8
    $region40: #{tpu_custom_call.1} parent=1 // pred_fallthru
      _
    // Predicated region
    $region41: #{tpu_custom_call.1} parent=1 // pred_check
      _
    $region42: #{tpu_custom_call.1} parent=1 // pred_check_branch
      %1129 = sbr.rel (0) target = $region44
    $region43: #{tpu_custom_call.1} parent=1 // pred_region
      %1130 = dma.done [#allocation6], 256
    $region44: #{tpu_custom_call.1} parent=1 // pred_fallthru
      _
    %1131 = vsyncpa [#allocation5], 1
    %1132 = vsyncpa [#allocation8], 1
    %1133 = vsyncpa [#allocation6], 1

</llo_original>
